<compile_context>
chip_gen: v6e
topology: v6e:2x2x1
jax: 0.10.0
libtpu: 0.0.40
codegen_flags: <defaults>
</compile_context>

<pallas_src>
import functools

import jax
import jax.numpy as jnp
from jax.experimental import pallas as pl
from jax.experimental.pallas import tpu as pltpu


def _brnn_kernel(x2_ref,                       # (T, N, 2D)  [x_t | x_{T-1-t}]
                 w_in_ref,                     # (2D, 2H)    blockdiag(Waxf^T, Waxb^T)
                 b_in_ref,                     # (1, 2H)     [baf | bab]
                 waa_ref,                      # (2H, 2H)    blockdiag(Waaf^T, Waab^T)
                 wlin_ref,                     # (2H, U)     w_lin^T
                 blin_ref,                     # (1, U)
                 y_ref,                        # (O, N, U)   only last O time steps
                 *, time_steps, output_dim):
    T = time_steps
    O = output_dim
    N = x2_ref.shape[1]
    HH = waa_ref.shape[0]

    w_in = w_in_ref[...]
    waa = waa_ref[...]
    # Hoist the bias broadcasts out of the (unrolled) loop.
    b_in = jnp.broadcast_to(b_in_ref[...], (N, HH))

    a = jnp.zeros((N, HH), jnp.float32)
    tails = []
    # T is small and static: fully unroll so the LLO scheduler can overlap the
    # independent per-step input projections / loads with the serial a -> a
    # recurrence (the only true dependency chain).
    for t in range(T):
        # act == Identity:  z_t = [x_t @ Waxf^T + baf | x_{T-1-t} @ Waxb^T + bab]
        z = jnp.dot(x2_ref[t], w_in, preferred_element_type=jnp.float32) + b_in
        # a_t = z_t + a_{t-1} @ blockdiag(Waaf^T, Waab^T)
        a = z + jnp.dot(a, waa, preferred_element_type=jnp.float32)
        if t >= T - O:
            tails.append(a)

    # Output head (acty == Identity), off the recurrent critical path and only
    # for the time steps the caller keeps.
    wlin = wlin_ref[...]
    blin = jnp.broadcast_to(blin_ref[...], (N, wlin.shape[1]))
    for i, a_t in enumerate(tails):
        y_ref[i] = jnp.dot(a_t, wlin, preferred_element_type=jnp.float32) + blin


def _full_spec(a):
    nd = a.ndim
    return pl.BlockSpec(a.shape, lambda i: (0,) * nd)


def brnn_forward(x, params, output_dim):
    """x: (N, T, D) float32.  Returns (N, output_dim, unit_output_dim)."""
    N, T, D = x.shape
    H = params["waaf"].shape[0]
    U = params["w_lin"].shape[0]
    HH = 2 * H
    f32 = jnp.float32

    # ---- wrapper-side layout plumbing & weight fusion (done once, in XLA) ----
    x_t = jnp.transpose(x, (1, 0, 2)).astype(f32)          # (T, N, D)
    x2 = jnp.concatenate([x_t, x_t[::-1]], axis=-1)        # (T, N, 2D)

    w_in = jnp.zeros((2 * D, HH), f32)
    w_in = w_in.at[:D, :H].set(params["waxf"].T.astype(f32))
    w_in = w_in.at[D:, H:].set(params["waxb"].T.astype(f32))
    b_in = jnp.concatenate([params["baf"], params["bab"]]).astype(f32).reshape(1, HH)

    waa = jnp.zeros((HH, HH), f32)
    waa = waa.at[:H, :H].set(params["waaf"].T.astype(f32))
    waa = waa.at[H:, H:].set(params["waab"].T.astype(f32))

    wlin = params["w_lin"].T.astype(f32)                    # (2H, U)
    blin = params["b_lin"].astype(f32).reshape(1, U)

    args = (x2, w_in, b_in, waa, wlin, blin)

    kernel = functools.partial(_brnn_kernel, time_steps=T, output_dim=output_dim)

    y = pl.pallas_call(
        kernel,
        out_shape=jax.ShapeDtypeStruct((output_dim, N, U), f32),
        grid=(1,),
        in_specs=[_full_spec(a) for a in args],
        out_specs=pl.BlockSpec((output_dim, N, U), lambda i: (0, 0, 0)),
        compiler_params=pltpu.CompilerParams(
            dimension_semantics=("arbitrary",)),
    )(*args)

    return jnp.transpose(y, (1, 0, 2))                      # (N, output_dim, U)


def brnn_reference(x, params, output_dim):
    """Pure-JAX re-implementation of the PyTorch forward (for checking)."""
    N, T, D = x.shape

    def run_rnn(xseq, wax, waa, ba):
        a = jnp.zeros((N, wax.shape[0]), jnp.float32)
        hs = []
        for t in range(T):
            a = xseq[:, t] @ wax.T + a @ waa.T + ba
            hs.append(a)
        return jnp.stack(hs, axis=1)                        # (N, T, H)

    A1 = run_rnn(x, params["waxf"], params["waaf"], params["baf"])
    A2 = run_rnn(x[:, ::-1], params["waxb"], params["waab"], params["bab"])
    A = jnp.concatenate([A1, A2], axis=-1)                  # (N, T, 2H)
    Y = A @ params["w_lin"].T + params["b_lin"]
    return Y[:, -output_dim:, :]


if __name__ == "__main__":
    # Small, deterministic config consistent with the module:
    # input_dim=4, act_dim=32, unit_output_dim=16, time_steps=8, output_dim=4.
    N, T, D, H, U = 2, 8, 4, 32, 16
    output_dim = 4

    key = jax.random.PRNGKey(0)
    ks = jax.random.split(key, 9)

    def init(k, shape, fan_in):
        bound = 1.0 / float(fan_in) ** 0.5
        return jax.random.uniform(k, shape, jnp.float32, -bound, bound)

    params = {
        "waxf": init(ks[0], (H, D), D),
        "waaf": init(ks[1], (H, H), H),
        "baf":  init(ks[2], (H,), H),
        "waxb": init(ks[3], (H, D), D),
        "waab": init(ks[4], (H, H), H),
        "bab":  init(ks[5], (H,), H),
        "w_lin": init(ks[6], (U, 2 * H), 2 * H),
        "b_lin": init(ks[7], (U,), 2 * H),
    }
    x = jax.random.normal(ks[8], (N, T, D), jnp.float32)

    y = brnn_forward(x, params, output_dim)
    y = jax.block_until_ready(y)

    y_ref = brnn_reference(x, params, output_dim)
    assert y.shape == (N, output_dim, U), y.shape
    assert jnp.allclose(y, y_ref, atol=1e-4, rtol=1e-4), "mismatch vs reference"

    print("KERNEL_OK")
</pallas_src>

<mosaic_0001>
module attributes {stable_mosaic.version = 11 : i64} {
  func.func @_brnn_kernel(%arg0: i32, %arg1: memref<8x2x8xf32, #tpu.memory_space<vmem>>, %arg2: memref<8x64xf32, #tpu.memory_space<vmem>>, %arg3: memref<1x64xf32, #tpu.memory_space<vmem>>, %arg4: memref<64x64xf32, #tpu.memory_space<vmem>>, %arg5: memref<64x16xf32, #tpu.memory_space<vmem>>, %arg6: memref<1x16xf32, #tpu.memory_space<vmem>>, %arg7: memref<4x2x16xf32, #tpu.memory_space<vmem>>) attributes {dimension_semantics = [#tpu.dimension_semantics<arbitrary>], iteration_bounds = array<i64: 1>, scalar_prefetch = 0 : i64, scratch_operands = 0 : i64, tpu.core_type = #tpu.core_type<tc>, window_params = [{pipeline_mode = #tpu.pipeline_mode<synchronous>, transform_indices = @transform_0, window_bounds = array<i64: 8, 2, 8>}, {pipeline_mode = #tpu.pipeline_mode<synchronous>, transform_indices = @transform_1, window_bounds = array<i64: 8, 64>}, {pipeline_mode = #tpu.pipeline_mode<synchronous>, transform_indices = @transform_2, window_bounds = array<i64: 1, 64>}, {pipeline_mode = #tpu.pipeline_mode<synchronous>, transform_indices = @transform_3, window_bounds = array<i64: 64, 64>}, {pipeline_mode = #tpu.pipeline_mode<synchronous>, transform_indices = @transform_4, window_bounds = array<i64: 64, 16>}, {pipeline_mode = #tpu.pipeline_mode<synchronous>, transform_indices = @transform_5, window_bounds = array<i64: 1, 16>}, {pipeline_mode = #tpu.pipeline_mode<synchronous>, transform_indices = @transform_6, window_bounds = array<i64: 4, 2, 16>}]} {
    %c0 = arith.constant 0 : index
    %c0_0 = arith.constant 0 : index
    %0 = vector.load %arg2[%c0, %c0_0] : memref<8x64xf32, #tpu.memory_space<vmem>>, vector<8x64xf32>
    %c0_1 = arith.constant 0 : index
    %c0_2 = arith.constant 0 : index
    %1 = vector.load %arg4[%c0_1, %c0_2] : memref<64x64xf32, #tpu.memory_space<vmem>>, vector<64x64xf32>
    %c0_3 = arith.constant 0 : index
    %c0_4 = arith.constant 0 : index
    %2 = vector.load %arg3[%c0_3, %c0_4] : memref<1x64xf32, #tpu.memory_space<vmem>>, vector<1x64xf32>
    %3 = vector.shape_cast %2 : vector<1x64xf32> to vector<1x64xf32>
    %4 = vector.broadcast %3 : vector<1x64xf32> to vector<2x64xf32>
    %cst = arith.constant 0.000000e+00 : f32
    %5 = vector.broadcast %cst : f32 to vector<2x64xf32>
    %c0_5 = arith.constant 0 : index
    %c0_6 = arith.constant 0 : index
    %c0_7 = arith.constant 0 : index
    %6 = vector.load %arg1[%c0_5, %c0_6, %c0_7] : memref<8x2x8xf32, #tpu.memory_space<vmem>>, vector<1x2x8xf32>
    %7 = vector.shape_cast %6 : vector<1x2x8xf32> to vector<2x8xf32>
    %cst_8 = arith.constant dense<0.000000e+00> : vector<2x64xf32>
    %8 = tpu.matmul %7, %0, %cst_8 {dimension_numbers = #tpu.dot_dimension_numbers<[1], [0], [0], [1], [0, 0, 1, 1], [], []>} : vector<2x8xf32>, vector<8x64xf32>, vector<2x64xf32> -> vector<2x64xf32>
    %9 = arith.addf %8, %4 : vector<2x64xf32>
    %cst_9 = arith.constant dense<0.000000e+00> : vector<2x64xf32>
    %10 = tpu.matmul %5, %1, %cst_9 {dimension_numbers = #tpu.dot_dimension_numbers<[1], [0], [0], [1], [0, 0, 1, 1], [], []>} : vector<2x64xf32>, vector<64x64xf32>, vector<2x64xf32> -> vector<2x64xf32>
    %11 = arith.addf %9, %10 : vector<2x64xf32>
    %c1 = arith.constant 1 : index
    %c0_10 = arith.constant 0 : index
    %c0_11 = arith.constant 0 : index
    %12 = vector.load %arg1[%c1, %c0_10, %c0_11] : memref<8x2x8xf32, #tpu.memory_space<vmem>>, vector<1x2x8xf32>
    %13 = vector.shape_cast %12 : vector<1x2x8xf32> to vector<2x8xf32>
    %cst_12 = arith.constant dense<0.000000e+00> : vector<2x64xf32>
    %14 = tpu.matmul %13, %0, %cst_12 {dimension_numbers = #tpu.dot_dimension_numbers<[1], [0], [0], [1], [0, 0, 1, 1], [], []>} : vector<2x8xf32>, vector<8x64xf32>, vector<2x64xf32> -> vector<2x64xf32>
    %15 = arith.addf %14, %4 : vector<2x64xf32>
    %cst_13 = arith.constant dense<0.000000e+00> : vector<2x64xf32>
    %16 = tpu.matmul %11, %1, %cst_13 {dimension_numbers = #tpu.dot_dimension_numbers<[1], [0], [0], [1], [0, 0, 1, 1], [], []>} : vector<2x64xf32>, vector<64x64xf32>, vector<2x64xf32> -> vector<2x64xf32>
    %17 = arith.addf %15, %16 : vector<2x64xf32>
    %c2 = arith.constant 2 : index
    %c0_14 = arith.constant 0 : index
    %c0_15 = arith.constant 0 : index
    %18 = vector.load %arg1[%c2, %c0_14, %c0_15] : memref<8x2x8xf32, #tpu.memory_space<vmem>>, vector<1x2x8xf32>
    %19 = vector.shape_cast %18 : vector<1x2x8xf32> to vector<2x8xf32>
    %cst_16 = arith.constant dense<0.000000e+00> : vector<2x64xf32>
    %20 = tpu.matmul %19, %0, %cst_16 {dimension_numbers = #tpu.dot_dimension_numbers<[1], [0], [0], [1], [0, 0, 1, 1], [], []>} : vector<2x8xf32>, vector<8x64xf32>, vector<2x64xf32> -> vector<2x64xf32>
    %21 = arith.addf %20, %4 : vector<2x64xf32>
    %cst_17 = arith.constant dense<0.000000e+00> : vector<2x64xf32>
    %22 = tpu.matmul %17, %1, %cst_17 {dimension_numbers = #tpu.dot_dimension_numbers<[1], [0], [0], [1], [0, 0, 1, 1], [], []>} : vector<2x64xf32>, vector<64x64xf32>, vector<2x64xf32> -> vector<2x64xf32>
    %23 = arith.addf %21, %22 : vector<2x64xf32>
    %c3 = arith.constant 3 : index
    %c0_18 = arith.constant 0 : index
    %c0_19 = arith.constant 0 : index
    %24 = vector.load %arg1[%c3, %c0_18, %c0_19] : memref<8x2x8xf32, #tpu.memory_space<vmem>>, vector<1x2x8xf32>
    %25 = vector.shape_cast %24 : vector<1x2x8xf32> to vector<2x8xf32>
    %cst_20 = arith.constant dense<0.000000e+00> : vector<2x64xf32>
    %26 = tpu.matmul %25, %0, %cst_20 {dimension_numbers = #tpu.dot_dimension_numbers<[1], [0], [0], [1], [0, 0, 1, 1], [], []>} : vector<2x8xf32>, vector<8x64xf32>, vector<2x64xf32> -> vector<2x64xf32>
    %27 = arith.addf %26, %4 : vector<2x64xf32>
    %cst_21 = arith.constant dense<0.000000e+00> : vector<2x64xf32>
    %28 = tpu.matmul %23, %1, %cst_21 {dimension_numbers = #tpu.dot_dimension_numbers<[1], [0], [0], [1], [0, 0, 1, 1], [], []>} : vector<2x64xf32>, vector<64x64xf32>, vector<2x64xf32> -> vector<2x64xf32>
    %29 = arith.addf %27, %28 : vector<2x64xf32>
    %c4 = arith.constant 4 : index
    %c0_22 = arith.constant 0 : index
    %c0_23 = arith.constant 0 : index
    %30 = vector.load %arg1[%c4, %c0_22, %c0_23] : memref<8x2x8xf32, #tpu.memory_space<vmem>>, vector<1x2x8xf32>
    %31 = vector.shape_cast %30 : vector<1x2x8xf32> to vector<2x8xf32>
    %cst_24 = arith.constant dense<0.000000e+00> : vector<2x64xf32>
    %32 = tpu.matmul %31, %0, %cst_24 {dimension_numbers = #tpu.dot_dimension_numbers<[1], [0], [0], [1], [0, 0, 1, 1], [], []>} : vector<2x8xf32>, vector<8x64xf32>, vector<2x64xf32> -> vector<2x64xf32>
    %33 = arith.addf %32, %4 : vector<2x64xf32>
    %cst_25 = arith.constant dense<0.000000e+00> : vector<2x64xf32>
    %34 = tpu.matmul %29, %1, %cst_25 {dimension_numbers = #tpu.dot_dimension_numbers<[1], [0], [0], [1], [0, 0, 1, 1], [], []>} : vector<2x64xf32>, vector<64x64xf32>, vector<2x64xf32> -> vector<2x64xf32>
    %35 = arith.addf %33, %34 : vector<2x64xf32>
    %c5 = arith.constant 5 : index
    %c0_26 = arith.constant 0 : index
    %c0_27 = arith.constant 0 : index
    %36 = vector.load %arg1[%c5, %c0_26, %c0_27] : memref<8x2x8xf32, #tpu.memory_space<vmem>>, vector<1x2x8xf32>
    %37 = vector.shape_cast %36 : vector<1x2x8xf32> to vector<2x8xf32>
    %cst_28 = arith.constant dense<0.000000e+00> : vector<2x64xf32>
    %38 = tpu.matmul %37, %0, %cst_28 {dimension_numbers = #tpu.dot_dimension_numbers<[1], [0], [0], [1], [0, 0, 1, 1], [], []>} : vector<2x8xf32>, vector<8x64xf32>, vector<2x64xf32> -> vector<2x64xf32>
    %39 = arith.addf %38, %4 : vector<2x64xf32>
    %cst_29 = arith.constant dense<0.000000e+00> : vector<2x64xf32>
    %40 = tpu.matmul %35, %1, %cst_29 {dimension_numbers = #tpu.dot_dimension_numbers<[1], [0], [0], [1], [0, 0, 1, 1], [], []>} : vector<2x64xf32>, vector<64x64xf32>, vector<2x64xf32> -> vector<2x64xf32>
    %41 = arith.addf %39, %40 : vector<2x64xf32>
    %c6 = arith.constant 6 : index
    %c0_30 = arith.constant 0 : index
    %c0_31 = arith.constant 0 : index
    %42 = vector.load %arg1[%c6, %c0_30, %c0_31] : memref<8x2x8xf32, #tpu.memory_space<vmem>>, vector<1x2x8xf32>
    %43 = vector.shape_cast %42 : vector<1x2x8xf32> to vector<2x8xf32>
    %cst_32 = arith.constant dense<0.000000e+00> : vector<2x64xf32>
    %44 = tpu.matmul %43, %0, %cst_32 {dimension_numbers = #tpu.dot_dimension_numbers<[1], [0], [0], [1], [0, 0, 1, 1], [], []>} : vector<2x8xf32>, vector<8x64xf32>, vector<2x64xf32> -> vector<2x64xf32>
    %45 = arith.addf %44, %4 : vector<2x64xf32>
    %cst_33 = arith.constant dense<0.000000e+00> : vector<2x64xf32>
    %46 = tpu.matmul %41, %1, %cst_33 {dimension_numbers = #tpu.dot_dimension_numbers<[1], [0], [0], [1], [0, 0, 1, 1], [], []>} : vector<2x64xf32>, vector<64x64xf32>, vector<2x64xf32> -> vector<2x64xf32>
    %47 = arith.addf %45, %46 : vector<2x64xf32>
    %c7 = arith.constant 7 : index
    %c0_34 = arith.constant 0 : index
    %c0_35 = arith.constant 0 : index
    %48 = vector.load %arg1[%c7, %c0_34, %c0_35] : memref<8x2x8xf32, #tpu.memory_space<vmem>>, vector<1x2x8xf32>
    %49 = vector.shape_cast %48 : vector<1x2x8xf32> to vector<2x8xf32>
    %cst_36 = arith.constant dense<0.000000e+00> : vector<2x64xf32>
    %50 = tpu.matmul %49, %0, %cst_36 {dimension_numbers = #tpu.dot_dimension_numbers<[1], [0], [0], [1], [0, 0, 1, 1], [], []>} : vector<2x8xf32>, vector<8x64xf32>, vector<2x64xf32> -> vector<2x64xf32>
    %51 = arith.addf %50, %4 : vector<2x64xf32>
    %cst_37 = arith.constant dense<0.000000e+00> : vector<2x64xf32>
    %52 = tpu.matmul %47, %1, %cst_37 {dimension_numbers = #tpu.dot_dimension_numbers<[1], [0], [0], [1], [0, 0, 1, 1], [], []>} : vector<2x64xf32>, vector<64x64xf32>, vector<2x64xf32> -> vector<2x64xf32>
    %53 = arith.addf %51, %52 : vector<2x64xf32>
    %c0_38 = arith.constant 0 : index
    %c0_39 = arith.constant 0 : index
    %54 = vector.load %arg5[%c0_38, %c0_39] : memref<64x16xf32, #tpu.memory_space<vmem>>, vector<64x16xf32>
    %c0_40 = arith.constant 0 : index
    %c0_41 = arith.constant 0 : index
    %55 = vector.load %arg6[%c0_40, %c0_41] : memref<1x16xf32, #tpu.memory_space<vmem>>, vector<1x16xf32>
    %56 = vector.shape_cast %55 : vector<1x16xf32> to vector<1x16xf32>
    %57 = vector.broadcast %56 : vector<1x16xf32> to vector<2x16xf32>
    %cst_42 = arith.constant dense<0.000000e+00> : vector<2x16xf32>
    %58 = tpu.matmul %35, %54, %cst_42 {dimension_numbers = #tpu.dot_dimension_numbers<[1], [0], [0], [1], [0, 0, 1, 1], [], []>} : vector<2x64xf32>, vector<64x16xf32>, vector<2x16xf32> -> vector<2x16xf32>
    %59 = arith.addf %58, %57 : vector<2x16xf32>
    %c0_43 = arith.constant 0 : index
    %c0_44 = arith.constant 0 : index
    %c0_45 = arith.constant 0 : index
    %60 = vector.load %arg7[%c0_43, %c0_44, %c0_45] : memref<4x2x16xf32, #tpu.memory_space<vmem>>, vector<1x2x16xf32>
    %61 = vector.shape_cast %60 : vector<1x2x16xf32> to vector<2x16xf32>
    %62 = vector.shape_cast %59 : vector<2x16xf32> to vector<1x2x16xf32>
    tpu.vector_store %arg7[%c0_43, %c0_44, %c0_45], %62 {strides = array<i32>} : memref<4x2x16xf32, #tpu.memory_space<vmem>>, vector<1x2x16xf32>,
    %cst_46 = arith.constant dense<0.000000e+00> : vector<2x16xf32>
    %63 = tpu.matmul %41, %54, %cst_46 {dimension_numbers = #tpu.dot_dimension_numbers<[1], [0], [0], [1], [0, 0, 1, 1], [], []>} : vector<2x64xf32>, vector<64x16xf32>, vector<2x16xf32> -> vector<2x16xf32>
    %64 = arith.addf %63, %57 : vector<2x16xf32>
    %c1_47 = arith.constant 1 : index
    %c0_48 = arith.constant 0 : index
    %c0_49 = arith.constant 0 : index
    %65 = vector.load %arg7[%c1_47, %c0_48, %c0_49] : memref<4x2x16xf32, #tpu.memory_space<vmem>>, vector<1x2x16xf32>
    %66 = vector.shape_cast %65 : vector<1x2x16xf32> to vector<2x16xf32>
    %67 = vector.shape_cast %64 : vector<2x16xf32> to vector<1x2x16xf32>
    tpu.vector_store %arg7[%c1_47, %c0_48, %c0_49], %67 {strides = array<i32>} : memref<4x2x16xf32, #tpu.memory_space<vmem>>, vector<1x2x16xf32>,
    %cst_50 = arith.constant dense<0.000000e+00> : vector<2x16xf32>
    %68 = tpu.matmul %47, %54, %cst_50 {dimension_numbers = #tpu.dot_dimension_numbers<[1], [0], [0], [1], [0, 0, 1, 1], [], []>} : vector<2x64xf32>, vector<64x16xf32>, vector<2x16xf32> -> vector<2x16xf32>
    %69 = arith.addf %68, %57 : vector<2x16xf32>
    %c2_51 = arith.constant 2 : index
    %c0_52 = arith.constant 0 : index
    %c0_53 = arith.constant 0 : index
    %70 = vector.load %arg7[%c2_51, %c0_52, %c0_53] : memref<4x2x16xf32, #tpu.memory_space<vmem>>, vector<1x2x16xf32>
    %71 = vector.shape_cast %70 : vector<1x2x16xf32> to vector<2x16xf32>
    %72 = vector.shape_cast %69 : vector<2x16xf32> to vector<1x2x16xf32>
    tpu.vector_store %arg7[%c2_51, %c0_52, %c0_53], %72 {strides = array<i32>} : memref<4x2x16xf32, #tpu.memory_space<vmem>>, vector<1x2x16xf32>,
    %cst_54 = arith.constant dense<0.000000e+00> : vector<2x16xf32>
    %73 = tpu.matmul %53, %54, %cst_54 {dimension_numbers = #tpu.dot_dimension_numbers<[1], [0], [0], [1], [0, 0, 1, 1], [], []>} : vector<2x64xf32>, vector<64x16xf32>, vector<2x16xf32> -> vector<2x16xf32>
    %74 = arith.addf %73, %57 : vector<2x16xf32>
    %c3_55 = arith.constant 3 : index
    %c0_56 = arith.constant 0 : index
    %c0_57 = arith.constant 0 : index
    %75 = vector.load %arg7[%c3_55, %c0_56, %c0_57] : memref<4x2x16xf32, #tpu.memory_space<vmem>>, vector<1x2x16xf32>
    %76 = vector.shape_cast %75 : vector<1x2x16xf32> to vector<2x16xf32>
    %77 = vector.shape_cast %74 : vector<2x16xf32> to vector<1x2x16xf32>
    tpu.vector_store %arg7[%c3_55, %c0_56, %c0_57], %77 {strides = array<i32>} : memref<4x2x16xf32, #tpu.memory_space<vmem>>, vector<1x2x16xf32>,
    return
  }
  func.func @transform_0(%arg0: i32) -> (i32, i32, i32) {
    %c0_i32 = arith.constant 0 : i32
    %c0_i32_0 = arith.constant 0 : i32
    %c0_i32_1 = arith.constant 0 : i32
    %c0_i32_2 = arith.constant 0 : i32
    return %c0_i32, %c0_i32_0, %c0_i32_1 : i32, i32, i32
  }
  func.func @transform_1(%arg0: i32) -> (i32, i32) {
    %c0_i32 = arith.constant 0 : i32
    %c0_i32_0 = arith.constant 0 : i32
    %c0_i32_1 = arith.constant 0 : i32
    return %c0_i32, %c0_i32_0 : i32, i32
  }
  func.func @transform_2(%arg0: i32) -> (i32, i32) {
    %c0_i32 = arith.constant 0 : i32
    %c0_i32_0 = arith.constant 0 : i32
    %c0_i32_1 = arith.constant 0 : i32
    return %c0_i32, %c0_i32_0 : i32, i32
  }
  func.func @transform_3(%arg0: i32) -> (i32, i32) {
    %c0_i32 = arith.constant 0 : i32
    %c0_i32_0 = arith.constant 0 : i32
    %c0_i32_1 = arith.constant 0 : i32
    return %c0_i32, %c0_i32_0 : i32, i32
  }
  func.func @transform_4(%arg0: i32) -> (i32, i32) {
    %c0_i32 = arith.constant 0 : i32
    %c0_i32_0 = arith.constant 0 : i32
    %c0_i32_1 = arith.constant 0 : i32
    return %c0_i32, %c0_i32_0 : i32, i32
  }
  func.func @transform_5(%arg0: i32) -> (i32, i32) {
    %c0_i32 = arith.constant 0 : i32
    %c0_i32_0 = arith.constant 0 : i32
    %c0_i32_1 = arith.constant 0 : i32
    return %c0_i32, %c0_i32_0 : i32, i32
  }
  func.func @transform_6(%arg0: i32) -> (i32, i32, i32) {
    %c0_i32 = arith.constant 0 : i32
    %c0_i32_0 = arith.constant 0 : i32
    %c0_i32_1 = arith.constant 0 : i32
    %c0_i32_2 = arith.constant 0 : i32
    return %c0_i32, %c0_i32_0, %c0_i32_1 : i32, i32, i32
  }
}

</mosaic_0001>

<llo_original>
// kernel: tpu_custom_call.1
$region0: #{tpu_custom_call.1}
  #allocation0 [shape = 'u32[]', space=smem, size = 0x4, offset = 0x4, fixed_abs, tag = 'smem constant byte address 0x4 - core index']
  #allocation1 [shape = 'u32[144,128]{1,0:T(1,128)}', space=vmem, size = 0x12000, scoped, tag = 'internal scratch']
  %s0 = inlined_call_operand.vmem [shape: f32[8,2,8], index: 0, kind: input, shape index: {}]
  %s1 = inlined_call_operand.hbm [shape: f32[8,64], index: 1, kind: input, shape index: {}]
  %s2 = inlined_call_operand.vmem [shape: f32[1,64], index: 2, kind: input, shape index: {}]
  %s3 = inlined_call_operand.vmem [shape: f32[64,64], index: 3, kind: input, shape index: {}]
  %s4 = inlined_call_operand.vmem [shape: f32[64,16], index: 4, kind: input, shape index: {}]
  %s5 = inlined_call_operand.vmem [shape: f32[1,16], index: 5, kind: input, shape index: {}]
  %s6 = inlined_call_operand.hbm [shape: f32[4,2,16], index: 6, kind: output, shape index: {}]
  %s7 = sld [smem:[#allocation0]]
  $region38: #{tpu_custom_call.1} parent=0
    _
  %s9 = ssub.s32 1, %s7
  %s10 = scalar_select 0, %s9, %s7
  $region1: #{tpu_custom_call.1} parent=0
    #allocation2 [shape = 'u8[4096]{0}', space=vmem, size = 0x1000, scoped, tag = 'input window, operand 1, single buffered']
    #allocation3 [shape = 's32[1]{0}', space=sflag, size = 0x4, scoped, tag = 'scoped memory for tpu_custom_call.1']
    #allocation4 [shape = 's32[1]{0}', space=sflag, size = 0x4, scoped, tag = 'scoped memory for tpu_custom_call.1']
    #allocation5 [shape = 'u8[4096]{0}', space=vmem, size = 0x1000, scoped, tag = 'output window, operand 0, single buffered']
    %11 = vsyncpa [#allocation3], 0
    %12 = vsyncpa [#allocation4], 0
    // Predicated region
    $region2: #{tpu_custom_call.1} parent=1 // pred_check
      _
    $region3: #{tpu_custom_call.1} parent=1 // pred_check_branch
      %14 = sbr.rel (0) target = $region5
    $region4: #{tpu_custom_call.1} parent=1 // pred_region
      _
    $region5: #{tpu_custom_call.1} parent=1 // pred_fallthru
      _
    // Predicated region
    $region6: #{tpu_custom_call.1} parent=1 // pred_check
      _
    $region7: #{tpu_custom_call.1} parent=1 // pred_check_branch
      %16 = sbr.rel (0) target = $region9
    $region8: #{tpu_custom_call.1} parent=1 // pred_region
      %s18 = ssub.s32 128, 128
      %19 = vsyncadd [#allocation3], %s18
      %s21 = sshll.u32 [#allocation2], 4
      %s22 = int_to_ptr.vmem [resolvable:$true] %s21
      %24 = dma.hbm_to_vmem [thread:$0]  %s1, 128, %s22, [#allocation3]
    $region9: #{tpu_custom_call.1} parent=1 // pred_fallthru
      _
    // Predicated region
    $region10: #{tpu_custom_call.1} parent=1 // pred_check
      _
    $region11: #{tpu_custom_call.1} parent=1 // pred_check_branch
      %26 = sbr.rel (0) target = $region13
    $region12: #{tpu_custom_call.1} parent=1 // pred_region
      _
    $region13: #{tpu_custom_call.1} parent=1 // pred_fallthru
      _
    // Predicated region
    $region14: #{tpu_custom_call.1} parent=1 // pred_check
      _
    $region15: #{tpu_custom_call.1} parent=1 // pred_check_branch
      %28 = sbr.rel (0) target = $region17
    $region16: #{tpu_custom_call.1} parent=1 // pred_region
      _
    $region17: #{tpu_custom_call.1} parent=1 // pred_fallthru
      _
    // Predicated region
    $region18: #{tpu_custom_call.1} parent=1 // pred_check
      _
    $region19: #{tpu_custom_call.1} parent=1 // pred_check_branch
      %30 = sbr.rel (0) target = $region21
    $region20: #{tpu_custom_call.1} parent=1 // pred_region
      _
    $region21: #{tpu_custom_call.1} parent=1 // pred_fallthru
      _
    // Predicated region
    $region22: #{tpu_custom_call.1} parent=1 // pred_check
      _
    $region23: #{tpu_custom_call.1} parent=1 // pred_check_branch
      %32 = sbr.rel (0) target = $region25
    $region24: #{tpu_custom_call.1} parent=1 // pred_region
      _
    $region25: #{tpu_custom_call.1} parent=1 // pred_fallthru
      _
    // Predicated region
    $region26: #{tpu_custom_call.1} parent=1 // pred_check
      _
    $region27: #{tpu_custom_call.1} parent=1 // pred_check_branch
      %34 = sbr.rel (0) target = $region29
    $region28: #{tpu_custom_call.1} parent=1 // pred_region
      %35 = dma.done [#allocation3], 128
    $region29: #{tpu_custom_call.1} parent=1 // pred_fallthru
      _
    %v36 = vld [vmem:[#allocation2] sm:$0xff]
    %v37 = vld [vmem:[%s3] sm:$0xff]
    %v38 = vld [vmem:[%s3 + $0x8] sm:$0xff]
    %v39 = vld [vmem:[%s3 + $0x10] sm:$0xff]
    %v40 = vld [vmem:[%s3 + $0x18] sm:$0xff]
    %v41 = vld [vmem:[%s3 + $0x20] sm:$0xff]
    %v42 = vld [vmem:[%s3 + $0x28] sm:$0xff]
    %v43 = vld [vmem:[%s3 + $0x30] sm:$0xff]
    %v44 = vld [vmem:[%s3 + $0x38] sm:$0xff]
    %v45 = vld [vmem:[%s2] sm:$0x1]
    %v47 = vlaneseq
    %v48 = vshrl.u32 %v47, 7
    %v49 = vsub.s32 0, %v48
    %v50 = vrot.slane %v45, %v49
    %v52 = vld [vmem:[%s0] sm:$0x3]
    %vm53 = vcmask 64512
    %v55 = vsel %vm53, %v52, 0
    %57 = vmatprep.subr.mxu0 0.0
    %58 = vmatpush1.msra.mxu0 0.0
    %59 = vmatprep.subr.mxu0 0.0
    %60 = vmatpush1.msra.mxu0 0.0
    %61 = vmatprep.subr.mxu0 0.0
    %62 = vmatpush1.msra.mxu0 0.0
    %63 = vmatprep.subr.mxu0 0.0
    %64 = vmatpush1.msra.mxu0 0.0
    %65 = vmatprep.subr.mxu0 0.0
    %66 = vmatpush1.msra.mxu0 0.0
    %67 = vmatprep.subr.mxu0 0.0
    %68 = vmatpush1.msra.mxu0 0.0
    %69 = vmatprep.subr.mxu0 0.0
    %70 = vmatpush1.msra.mxu0 0.0
    %71 = vmatprep.subr.mxu0 0.0
    %72 = vmatpush1.msra.mxu0 0.0
    %73 = vmatprep.subr.mxu0 0.0
    %74 = vmatpush1.msra.mxu0 0.0
    %75 = vmatprep.subr.mxu0 0.0
    %76 = vmatpush1.msra.mxu0 0.0
    %77 = vmatprep.subr.mxu0 0.0
    %78 = vmatpush1.msra.mxu0 0.0
    %79 = vmatprep.subr.mxu0 0.0
    %80 = vmatpush1.msra.mxu0 0.0
    %81 = vmatprep.subr.mxu0 0.0
    %82 = vmatpush1.msra.mxu0 0.0
    %83 = vmatprep.subr.mxu0 0.0
    %84 = vmatpush1.msra.mxu0 0.0
    %85 = vmatprep.subr.mxu0 0.0
    %86 = vmatpush1.msra.mxu0 0.0
    %87 = vmatprep.subr.mxu0 0.0
    %88 = vmatpush1.msra.mxu0 %v36
    %89 = vmatprep.subr.mxu0 0.0
    %90 = vmatpush2.msra.mxu0 0.0
    %91 = vmatprep.subr.mxu0 0.0
    %92 = vmatpush2.msra.mxu0 0.0
    %93 = vmatprep.subr.mxu0 0.0
    %94 = vmatpush2.msra.mxu0 0.0
    %95 = vmatprep.subr.mxu0 0.0
    %96 = vmatpush2.msra.mxu0 0.0
    %97 = vmatprep.subr.mxu0 0.0
    %98 = vmatpush2.msra.mxu0 0.0
    %99 = vmatprep.subr.mxu0 0.0
    %100 = vmatpush2.msra.mxu0 0.0
    %101 = vmatprep.subr.mxu0 0.0
    %102 = vmatpush2.msra.mxu0 0.0
    %103 = vmatprep.subr.mxu0 0.0
    %104 = vmatpush2.msra.mxu0 0.0
    %105 = vmatprep.subr.mxu0 0.0
    %106 = vmatpush2.msra.mxu0 0.0
    %107 = vmatprep.subr.mxu0 0.0
    %108 = vmatpush2.msra.mxu0 0.0
    %109 = vmatprep.subr.mxu0 0.0
    %110 = vmatpush2.msra.mxu0 0.0
    %111 = vmatprep.subr.mxu0 0.0
    %112 = vmatpush2.msra.mxu0 0.0
    %113 = vmatprep.subr.mxu0 0.0
    %114 = vmatpush2.msra.mxu0 0.0
    %115 = vmatprep.subr.mxu0 0.0
    %116 = vmatpush2.msra.mxu0 0.0
    %117 = vmatprep.subr.mxu0 0.0
    %118 = vmatpush2.msra.mxu0 0.0
    %119 = vmatprep.subr.mxu0 0.0
    %120 = vmatpush2.msra.mxu0 0.0
    %121 = vmatprep.mubr.f32.mxu0 0.0
    %122 = vmatmul.mubr.f32.gmra.mxu0 %v55
    %v123 = vpop.f32.mrf.mxu0
    %v124 = vadd.f32 %v50, %v123
    %v125 = vpop.f32.mrf.mxu0
    %126 = vdwg.mxu0
    %vm127 = vcmask 523264
    %v129 = vsel %vm127, 0.0, 0
    %131 = vmatprep.subr.mxu0 0.0
    %132 = vmatpush1.msra.mxu0 0.0
    %133 = vmatprep.subr.mxu0 0.0
    %134 = vmatpush1.msra.mxu0 0.0
    %135 = vmatprep.subr.mxu0 0.0
    %136 = vmatpush1.msra.mxu0 0.0
    %137 = vmatprep.subr.mxu0 0.0
    %138 = vmatpush1.msra.mxu0 0.0
    %139 = vmatprep.subr.mxu0 0.0
    %140 = vmatpush1.msra.mxu0 0.0
    %141 = vmatprep.subr.mxu0 0.0
    %142 = vmatpush1.msra.mxu0 0.0
    %143 = vmatprep.subr.mxu0 0.0
    %144 = vmatpush1.msra.mxu0 0.0
    %145 = vmatprep.subr.mxu0 0.0
    %146 = vmatpush1.msra.mxu0 0.0
    %147 = vmatprep.subr.mxu0 0.0
    %148 = vmatpush1.msra.mxu0 %v44
    %149 = vmatprep.subr.mxu0 0.0
    %150 = vmatpush1.msra.mxu0 %v43
    %151 = vmatprep.subr.mxu0 0.0
    %152 = vmatpush1.msra.mxu0 %v42
    %153 = vmatprep.subr.mxu0 0.0
    %154 = vmatpush1.msra.mxu0 %v41
    %155 = vmatprep.subr.mxu0 0.0
    %156 = vmatpush1.msra.mxu0 %v40
    %157 = vmatprep.subr.mxu0 0.0
    %158 = vmatpush1.msra.mxu0 %v39
    %159 = vmatprep.subr.mxu0 0.0
    %160 = vmatpush1.msra.mxu0 %v38
    %161 = vmatprep.subr.mxu0 0.0
    %162 = vmatpush1.msra.mxu0 %v37
    %163 = vmatprep.subr.mxu0 0.0
    %164 = vmatpush2.msra.mxu0 0.0
    %165 = vmatprep.subr.mxu0 0.0
    %166 = vmatpush2.msra.mxu0 0.0
    %167 = vmatprep.subr.mxu0 0.0
    %168 = vmatpush2.msra.mxu0 0.0
    %169 = vmatprep.subr.mxu0 0.0
    %170 = vmatpush2.msra.mxu0 0.0
    %171 = vmatprep.subr.mxu0 0.0
    %172 = vmatpush2.msra.mxu0 0.0
    %173 = vmatprep.subr.mxu0 0.0
    %174 = vmatpush2.msra.mxu0 0.0
    %175 = vmatprep.subr.mxu0 0.0
    %176 = vmatpush2.msra.mxu0 0.0
    %177 = vmatprep.subr.mxu0 0.0
    %178 = vmatpush2.msra.mxu0 0.0
    %179 = vmatprep.subr.mxu0 0.0
    %180 = vmatpush2.msra.mxu0 0.0
    %181 = vmatprep.subr.mxu0 0.0
    %182 = vmatpush2.msra.mxu0 0.0
    %183 = vmatprep.subr.mxu0 0.0
    %184 = vmatpush2.msra.mxu0 0.0
    %185 = vmatprep.subr.mxu0 0.0
    %186 = vmatpush2.msra.mxu0 0.0
    %187 = vmatprep.subr.mxu0 0.0
    %188 = vmatpush2.msra.mxu0 0.0
    %189 = vmatprep.subr.mxu0 0.0
    %190 = vmatpush2.msra.mxu0 0.0
    %191 = vmatprep.subr.mxu0 0.0
    %192 = vmatpush2.msra.mxu0 0.0
    %193 = vmatprep.subr.mxu0 0.0
    %194 = vmatpush2.msra.mxu0 0.0
    %195 = vmatprep.mubr.f32.mxu0 0.0
    %196 = vmatmul.mubr.f32.gmra.mxu0 %v129
    %v197 = vpop.f32.mrf.mxu0
    %v198 = vadd.f32 0.0, %v197
    %v199 = vpop.f32.mrf.mxu0
    %200 = vdwg.mxu0
    %v201 = vadd.f32 %v124, %v198
    %s202 = scalar_lea.vmem %s0, 2
    %v203 = vld [vmem:[%s202] sm:$0x3]
    %v205 = vsel %vm53, %v203, 0
    %207 = vmatprep.subr.mxu0 0.0
    %208 = vmatpush1.msra.mxu0 0.0
    %209 = vmatprep.subr.mxu0 0.0
    %210 = vmatpush1.msra.mxu0 0.0
    %211 = vmatprep.subr.mxu0 0.0
    %212 = vmatpush1.msra.mxu0 0.0
    %213 = vmatprep.subr.mxu0 0.0
    %214 = vmatpush1.msra.mxu0 0.0
    %215 = vmatprep.subr.mxu0 0.0
    %216 = vmatpush1.msra.mxu0 0.0
    %217 = vmatprep.subr.mxu0 0.0
    %218 = vmatpush1.msra.mxu0 0.0
    %219 = vmatprep.subr.mxu0 0.0
    %220 = vmatpush1.msra.mxu0 0.0
    %221 = vmatprep.subr.mxu0 0.0
    %222 = vmatpush1.msra.mxu0 0.0
    %223 = vmatprep.subr.mxu0 0.0
    %224 = vmatpush1.msra.mxu0 0.0
    %225 = vmatprep.subr.mxu0 0.0
    %226 = vmatpush1.msra.mxu0 0.0
    %227 = vmatprep.subr.mxu0 0.0
    %228 = vmatpush1.msra.mxu0 0.0
    %229 = vmatprep.subr.mxu0 0.0
    %230 = vmatpush1.msra.mxu0 0.0
    %231 = vmatprep.subr.mxu0 0.0
    %232 = vmatpush1.msra.mxu0 0.0
    %233 = vmatprep.subr.mxu0 0.0
    %234 = vmatpush1.msra.mxu0 0.0
    %235 = vmatprep.subr.mxu0 0.0
    %236 = vmatpush1.msra.mxu0 0.0
    %237 = vmatprep.subr.mxu0 0.0
    %238 = vmatpush1.msra.mxu0 %v36
    %239 = vmatprep.subr.mxu0 0.0
    %240 = vmatpush2.msra.mxu0 0.0
    %241 = vmatprep.subr.mxu0 0.0
    %242 = vmatpush2.msra.mxu0 0.0
    %243 = vmatprep.subr.mxu0 0.0
    %244 = vmatpush2.msra.mxu0 0.0
    %245 = vmatprep.subr.mxu0 0.0
    %246 = vmatpush2.msra.mxu0 0.0
    %247 = vmatprep.subr.mxu0 0.0
    %248 = vmatpush2.msra.mxu0 0.0
    %249 = vmatprep.subr.mxu0 0.0
    %250 = vmatpush2.msra.mxu0 0.0
    %251 = vmatprep.subr.mxu0 0.0
    %252 = vmatpush2.msra.mxu0 0.0
    %253 = vmatprep.subr.mxu0 0.0
    %254 = vmatpush2.msra.mxu0 0.0
    %255 = vmatprep.subr.mxu0 0.0
    %256 = vmatpush2.msra.mxu0 0.0
    %257 = vmatprep.subr.mxu0 0.0
    %258 = vmatpush2.msra.mxu0 0.0
    %259 = vmatprep.subr.mxu0 0.0
    %260 = vmatpush2.msra.mxu0 0.0
    %261 = vmatprep.subr.mxu0 0.0
    %262 = vmatpush2.msra.mxu0 0.0
    %263 = vmatprep.subr.mxu0 0.0
    %264 = vmatpush2.msra.mxu0 0.0
    %265 = vmatprep.subr.mxu0 0.0
    %266 = vmatpush2.msra.mxu0 0.0
    %267 = vmatprep.subr.mxu0 0.0
    %268 = vmatpush2.msra.mxu0 0.0
    %269 = vmatprep.subr.mxu0 0.0
    %270 = vmatpush2.msra.mxu0 0.0
    %271 = vmatprep.mubr.f32.mxu0 0.0
    %272 = vmatmul.mubr.f32.gmra.mxu0 %v205
    %v273 = vpop.f32.mrf.mxu0
    %v274 = vadd.f32 %v50, %v273
    %v275 = vpop.f32.mrf.mxu0
    %276 = vdwg.mxu0
    %v278 = vsel %vm127, %v201, 0
    %280 = vmatprep.subr.mxu0 0.0
    %281 = vmatpush1.msra.mxu0 0.0
    %282 = vmatprep.subr.mxu0 0.0
    %283 = vmatpush1.msra.mxu0 0.0
    %284 = vmatprep.subr.mxu0 0.0
    %285 = vmatpush1.msra.mxu0 0.0
    %286 = vmatprep.subr.mxu0 0.0
    %287 = vmatpush1.msra.mxu0 0.0
    %288 = vmatprep.subr.mxu0 0.0
    %289 = vmatpush1.msra.mxu0 0.0
    %290 = vmatprep.subr.mxu0 0.0
    %291 = vmatpush1.msra.mxu0 0.0
    %292 = vmatprep.subr.mxu0 0.0
    %293 = vmatpush1.msra.mxu0 0.0
    %294 = vmatprep.subr.mxu0 0.0
    %295 = vmatpush1.msra.mxu0 0.0
    %296 = vmatprep.subr.mxu0 0.0
    %297 = vmatpush1.msra.mxu0 %v44
    %298 = vmatprep.subr.mxu0 0.0
    %299 = vmatpush1.msra.mxu0 %v43
    %300 = vmatprep.subr.mxu0 0.0
    %301 = vmatpush1.msra.mxu0 %v42
    %302 = vmatprep.subr.mxu0 0.0
    %303 = vmatpush1.msra.mxu0 %v41
    %304 = vmatprep.subr.mxu0 0.0
    %305 = vmatpush1.msra.mxu0 %v40
    %306 = vmatprep.subr.mxu0 0.0
    %307 = vmatpush1.msra.mxu0 %v39
    %308 = vmatprep.subr.mxu0 0.0
    %309 = vmatpush1.msra.mxu0 %v38
    %310 = vmatprep.subr.mxu0 0.0
    %311 = vmatpush1.msra.mxu0 %v37
    %312 = vmatprep.subr.mxu0 0.0
    %313 = vmatpush2.msra.mxu0 0.0
    %314 = vmatprep.subr.mxu0 0.0
    %315 = vmatpush2.msra.mxu0 0.0
    %316 = vmatprep.subr.mxu0 0.0
    %317 = vmatpush2.msra.mxu0 0.0
    %318 = vmatprep.subr.mxu0 0.0
    %319 = vmatpush2.msra.mxu0 0.0
    %320 = vmatprep.subr.mxu0 0.0
    %321 = vmatpush2.msra.mxu0 0.0
    %322 = vmatprep.subr.mxu0 0.0
    %323 = vmatpush2.msra.mxu0 0.0
    %324 = vmatprep.subr.mxu0 0.0
    %325 = vmatpush2.msra.mxu0 0.0
    %326 = vmatprep.subr.mxu0 0.0
    %327 = vmatpush2.msra.mxu0 0.0
    %328 = vmatprep.subr.mxu0 0.0
    %329 = vmatpush2.msra.mxu0 0.0
    %330 = vmatprep.subr.mxu0 0.0
    %331 = vmatpush2.msra.mxu0 0.0
    %332 = vmatprep.subr.mxu0 0.0
    %333 = vmatpush2.msra.mxu0 0.0
    %334 = vmatprep.subr.mxu0 0.0
    %335 = vmatpush2.msra.mxu0 0.0
    %336 = vmatprep.subr.mxu0 0.0
    %337 = vmatpush2.msra.mxu0 0.0
    %338 = vmatprep.subr.mxu0 0.0
    %339 = vmatpush2.msra.mxu0 0.0
    %340 = vmatprep.subr.mxu0 0.0
    %341 = vmatpush2.msra.mxu0 0.0
    %342 = vmatprep.subr.mxu0 0.0
    %343 = vmatpush2.msra.mxu0 0.0
    %344 = vmatprep.mubr.f32.mxu0 0.0
    %345 = vmatmul.mubr.f32.gmra.mxu0 %v278
    %v346 = vpop.f32.mrf.mxu0
    %v347 = vadd.f32 0.0, %v346
    %v348 = vpop.f32.mrf.mxu0
    %349 = vdwg.mxu0
    %v350 = vadd.f32 %v274, %v347
    %s351 = scalar_lea.vmem %s0, 4
    %v352 = vld [vmem:[%s351] sm:$0x3]
    %v354 = vsel %vm53, %v352, 0
    %356 = vmatprep.subr.mxu0 0.0
    %357 = vmatpush1.msra.mxu0 0.0
    %358 = vmatprep.subr.mxu0 0.0
    %359 = vmatpush1.msra.mxu0 0.0
    %360 = vmatprep.subr.mxu0 0.0
    %361 = vmatpush1.msra.mxu0 0.0
    %362 = vmatprep.subr.mxu0 0.0
    %363 = vmatpush1.msra.mxu0 0.0
    %364 = vmatprep.subr.mxu0 0.0
    %365 = vmatpush1.msra.mxu0 0.0
    %366 = vmatprep.subr.mxu0 0.0
    %367 = vmatpush1.msra.mxu0 0.0
    %368 = vmatprep.subr.mxu0 0.0
    %369 = vmatpush1.msra.mxu0 0.0
    %370 = vmatprep.subr.mxu0 0.0
    %371 = vmatpush1.msra.mxu0 0.0
    %372 = vmatprep.subr.mxu0 0.0
    %373 = vmatpush1.msra.mxu0 0.0
    %374 = vmatprep.subr.mxu0 0.0
    %375 = vmatpush1.msra.mxu0 0.0
    %376 = vmatprep.subr.mxu0 0.0
    %377 = vmatpush1.msra.mxu0 0.0
    %378 = vmatprep.subr.mxu0 0.0
    %379 = vmatpush1.msra.mxu0 0.0
    %380 = vmatprep.subr.mxu0 0.0
    %381 = vmatpush1.msra.mxu0 0.0
    %382 = vmatprep.subr.mxu0 0.0
    %383 = vmatpush1.msra.mxu0 0.0
    %384 = vmatprep.subr.mxu0 0.0
    %385 = vmatpush1.msra.mxu0 0.0
    %386 = vmatprep.subr.mxu0 0.0
    %387 = vmatpush1.msra.mxu0 %v36
    %388 = vmatprep.subr.mxu0 0.0
    %389 = vmatpush2.msra.mxu0 0.0
    %390 = vmatprep.subr.mxu0 0.0
    %391 = vmatpush2.msra.mxu0 0.0
    %392 = vmatprep.subr.mxu0 0.0
    %393 = vmatpush2.msra.mxu0 0.0
    %394 = vmatprep.subr.mxu0 0.0
    %395 = vmatpush2.msra.mxu0 0.0
    %396 = vmatprep.subr.mxu0 0.0
    %397 = vmatpush2.msra.mxu0 0.0
    %398 = vmatprep.subr.mxu0 0.0
    %399 = vmatpush2.msra.mxu0 0.0
    %400 = vmatprep.subr.mxu0 0.0
    %401 = vmatpush2.msra.mxu0 0.0
    %402 = vmatprep.subr.mxu0 0.0
    %403 = vmatpush2.msra.mxu0 0.0
    %404 = vmatprep.subr.mxu0 0.0
    %405 = vmatpush2.msra.mxu0 0.0
    %406 = vmatprep.subr.mxu0 0.0
    %407 = vmatpush2.msra.mxu0 0.0
    %408 = vmatprep.subr.mxu0 0.0
    %409 = vmatpush2.msra.mxu0 0.0
    %410 = vmatprep.subr.mxu0 0.0
    %411 = vmatpush2.msra.mxu0 0.0
    %412 = vmatprep.subr.mxu0 0.0
    %413 = vmatpush2.msra.mxu0 0.0
    %414 = vmatprep.subr.mxu0 0.0
    %415 = vmatpush2.msra.mxu0 0.0
    %416 = vmatprep.subr.mxu0 0.0
    %417 = vmatpush2.msra.mxu0 0.0
    %418 = vmatprep.subr.mxu0 0.0
    %419 = vmatpush2.msra.mxu0 0.0
    %420 = vmatprep.mubr.f32.mxu0 0.0
    %421 = vmatmul.mubr.f32.gmra.mxu0 %v354
    %v422 = vpop.f32.mrf.mxu0
    %v423 = vadd.f32 %v50, %v422
    %v424 = vpop.f32.mrf.mxu0
    %425 = vdwg.mxu0
    %v427 = vsel %vm127, %v350, 0
    %429 = vmatprep.subr.mxu0 0.0
    %430 = vmatpush1.msra.mxu0 0.0
    %431 = vmatprep.subr.mxu0 0.0
    %432 = vmatpush1.msra.mxu0 0.0
    %433 = vmatprep.subr.mxu0 0.0
    %434 = vmatpush1.msra.mxu0 0.0
    %435 = vmatprep.subr.mxu0 0.0
    %436 = vmatpush1.msra.mxu0 0.0
    %437 = vmatprep.subr.mxu0 0.0
    %438 = vmatpush1.msra.mxu0 0.0
    %439 = vmatprep.subr.mxu0 0.0
    %440 = vmatpush1.msra.mxu0 0.0
    %441 = vmatprep.subr.mxu0 0.0
    %442 = vmatpush1.msra.mxu0 0.0
    %443 = vmatprep.subr.mxu0 0.0
    %444 = vmatpush1.msra.mxu0 0.0
    %445 = vmatprep.subr.mxu0 0.0
    %446 = vmatpush1.msra.mxu0 %v44
    %447 = vmatprep.subr.mxu0 0.0
    %448 = vmatpush1.msra.mxu0 %v43
    %449 = vmatprep.subr.mxu0 0.0
    %450 = vmatpush1.msra.mxu0 %v42
    %451 = vmatprep.subr.mxu0 0.0
    %452 = vmatpush1.msra.mxu0 %v41
    %453 = vmatprep.subr.mxu0 0.0
    %454 = vmatpush1.msra.mxu0 %v40
    %455 = vmatprep.subr.mxu0 0.0
    %456 = vmatpush1.msra.mxu0 %v39
    %457 = vmatprep.subr.mxu0 0.0
    %458 = vmatpush1.msra.mxu0 %v38
    %459 = vmatprep.subr.mxu0 0.0
    %460 = vmatpush1.msra.mxu0 %v37
    %461 = vmatprep.subr.mxu0 0.0
    %462 = vmatpush2.msra.mxu0 0.0
    %463 = vmatprep.subr.mxu0 0.0
    %464 = vmatpush2.msra.mxu0 0.0
    %465 = vmatprep.subr.mxu0 0.0
    %466 = vmatpush2.msra.mxu0 0.0
    %467 = vmatprep.subr.mxu0 0.0
    %468 = vmatpush2.msra.mxu0 0.0
    %469 = vmatprep.subr.mxu0 0.0
    %470 = vmatpush2.msra.mxu0 0.0
    %471 = vmatprep.subr.mxu0 0.0
    %472 = vmatpush2.msra.mxu0 0.0
    %473 = vmatprep.subr.mxu0 0.0
    %474 = vmatpush2.msra.mxu0 0.0
    %475 = vmatprep.subr.mxu0 0.0
    %476 = vmatpush2.msra.mxu0 0.0
    %477 = vmatprep.subr.mxu0 0.0
    %478 = vmatpush2.msra.mxu0 0.0
    %479 = vmatprep.subr.mxu0 0.0
    %480 = vmatpush2.msra.mxu0 0.0
    %481 = vmatprep.subr.mxu0 0.0
    %482 = vmatpush2.msra.mxu0 0.0
    %483 = vmatprep.subr.mxu0 0.0
    %484 = vmatpush2.msra.mxu0 0.0
    %485 = vmatprep.subr.mxu0 0.0
    %486 = vmatpush2.msra.mxu0 0.0
    %487 = vmatprep.subr.mxu0 0.0
    %488 = vmatpush2.msra.mxu0 0.0
    %489 = vmatprep.subr.mxu0 0.0
    %490 = vmatpush2.msra.mxu0 0.0
    %491 = vmatprep.subr.mxu0 0.0
    %492 = vmatpush2.msra.mxu0 0.0
    %493 = vmatprep.mubr.f32.mxu0 0.0
    %494 = vmatmul.mubr.f32.gmra.mxu0 %v427
    %v495 = vpop.f32.mrf.mxu0
    %v496 = vadd.f32 0.0, %v495
    %v497 = vpop.f32.mrf.mxu0
    %498 = vdwg.mxu0
    %v499 = vadd.f32 %v423, %v496
    %s500 = scalar_lea.vmem %s0, 6
    %v501 = vld [vmem:[%s500] sm:$0x3]
    %v503 = vsel %vm53, %v501, 0
    %505 = vmatprep.subr.mxu0 0.0
    %506 = vmatpush1.msra.mxu0 0.0
    %507 = vmatprep.subr.mxu0 0.0
    %508 = vmatpush1.msra.mxu0 0.0
    %509 = vmatprep.subr.mxu0 0.0
    %510 = vmatpush1.msra.mxu0 0.0
    %511 = vmatprep.subr.mxu0 0.0
    %512 = vmatpush1.msra.mxu0 0.0
    %513 = vmatprep.subr.mxu0 0.0
    %514 = vmatpush1.msra.mxu0 0.0
    %515 = vmatprep.subr.mxu0 0.0
    %516 = vmatpush1.msra.mxu0 0.0
    %517 = vmatprep.subr.mxu0 0.0
    %518 = vmatpush1.msra.mxu0 0.0
    %519 = vmatprep.subr.mxu0 0.0
    %520 = vmatpush1.msra.mxu0 0.0
    %521 = vmatprep.subr.mxu0 0.0
    %522 = vmatpush1.msra.mxu0 0.0
    %523 = vmatprep.subr.mxu0 0.0
    %524 = vmatpush1.msra.mxu0 0.0
    %525 = vmatprep.subr.mxu0 0.0
    %526 = vmatpush1.msra.mxu0 0.0
    %527 = vmatprep.subr.mxu0 0.0
    %528 = vmatpush1.msra.mxu0 0.0
    %529 = vmatprep.subr.mxu0 0.0
    %530 = vmatpush1.msra.mxu0 0.0
    %531 = vmatprep.subr.mxu0 0.0
    %532 = vmatpush1.msra.mxu0 0.0
    %533 = vmatprep.subr.mxu0 0.0
    %534 = vmatpush1.msra.mxu0 0.0
    %535 = vmatprep.subr.mxu0 0.0
    %536 = vmatpush1.msra.mxu0 %v36
    %537 = vmatprep.subr.mxu0 0.0
    %538 = vmatpush2.msra.mxu0 0.0
    %539 = vmatprep.subr.mxu0 0.0
    %540 = vmatpush2.msra.mxu0 0.0
    %541 = vmatprep.subr.mxu0 0.0
    %542 = vmatpush2.msra.mxu0 0.0
    %543 = vmatprep.subr.mxu0 0.0
    %544 = vmatpush2.msra.mxu0 0.0
    %545 = vmatprep.subr.mxu0 0.0
    %546 = vmatpush2.msra.mxu0 0.0
    %547 = vmatprep.subr.mxu0 0.0
    %548 = vmatpush2.msra.mxu0 0.0
    %549 = vmatprep.subr.mxu0 0.0
    %550 = vmatpush2.msra.mxu0 0.0
    %551 = vmatprep.subr.mxu0 0.0
    %552 = vmatpush2.msra.mxu0 0.0
    %553 = vmatprep.subr.mxu0 0.0
    %554 = vmatpush2.msra.mxu0 0.0
    %555 = vmatprep.subr.mxu0 0.0
    %556 = vmatpush2.msra.mxu0 0.0
    %557 = vmatprep.subr.mxu0 0.0
    %558 = vmatpush2.msra.mxu0 0.0
    %559 = vmatprep.subr.mxu0 0.0
    %560 = vmatpush2.msra.mxu0 0.0
    %561 = vmatprep.subr.mxu0 0.0
    %562 = vmatpush2.msra.mxu0 0.0
    %563 = vmatprep.subr.mxu0 0.0
    %564 = vmatpush2.msra.mxu0 0.0
    %565 = vmatprep.subr.mxu0 0.0
    %566 = vmatpush2.msra.mxu0 0.0
    %567 = vmatprep.subr.mxu0 0.0
    %568 = vmatpush2.msra.mxu0 0.0
    %569 = vmatprep.mubr.f32.mxu0 0.0
    %570 = vmatmul.mubr.f32.gmra.mxu0 %v503
    %v571 = vpop.f32.mrf.mxu0
    %v572 = vadd.f32 %v50, %v571
    %v573 = vpop.f32.mrf.mxu0
    %574 = vdwg.mxu0
    %v576 = vsel %vm127, %v499, 0
    %578 = vmatprep.subr.mxu0 0.0
    %579 = vmatpush1.msra.mxu0 0.0
    %580 = vmatprep.subr.mxu0 0.0
    %581 = vmatpush1.msra.mxu0 0.0
    %582 = vmatprep.subr.mxu0 0.0
    %583 = vmatpush1.msra.mxu0 0.0
    %584 = vmatprep.subr.mxu0 0.0
    %585 = vmatpush1.msra.mxu0 0.0
    %586 = vmatprep.subr.mxu0 0.0
    %587 = vmatpush1.msra.mxu0 0.0
    %588 = vmatprep.subr.mxu0 0.0
    %589 = vmatpush1.msra.mxu0 0.0
    %590 = vmatprep.subr.mxu0 0.0
    %591 = vmatpush1.msra.mxu0 0.0
    %592 = vmatprep.subr.mxu0 0.0
    %593 = vmatpush1.msra.mxu0 0.0
    %594 = vmatprep.subr.mxu0 0.0
    %595 = vmatpush1.msra.mxu0 %v44
    %596 = vmatprep.subr.mxu0 0.0
    %597 = vmatpush1.msra.mxu0 %v43
    %598 = vmatprep.subr.mxu0 0.0
    %599 = vmatpush1.msra.mxu0 %v42
    %600 = vmatprep.subr.mxu0 0.0
    %601 = vmatpush1.msra.mxu0 %v41
    %602 = vmatprep.subr.mxu0 0.0
    %603 = vmatpush1.msra.mxu0 %v40
    %604 = vmatprep.subr.mxu0 0.0
    %605 = vmatpush1.msra.mxu0 %v39
    %606 = vmatprep.subr.mxu0 0.0
    %607 = vmatpush1.msra.mxu0 %v38
    %608 = vmatprep.subr.mxu0 0.0
    %609 = vmatpush1.msra.mxu0 %v37
    %610 = vmatprep.subr.mxu0 0.0
    %611 = vmatpush2.msra.mxu0 0.0
    %612 = vmatprep.subr.mxu0 0.0
    %613 = vmatpush2.msra.mxu0 0.0
    %614 = vmatprep.subr.mxu0 0.0
    %615 = vmatpush2.msra.mxu0 0.0
    %616 = vmatprep.subr.mxu0 0.0
    %617 = vmatpush2.msra.mxu0 0.0
    %618 = vmatprep.subr.mxu0 0.0
    %619 = vmatpush2.msra.mxu0 0.0
    %620 = vmatprep.subr.mxu0 0.0
    %621 = vmatpush2.msra.mxu0 0.0
    %622 = vmatprep.subr.mxu0 0.0
    %623 = vmatpush2.msra.mxu0 0.0
    %624 = vmatprep.subr.mxu0 0.0
    %625 = vmatpush2.msra.mxu0 0.0
    %626 = vmatprep.subr.mxu0 0.0
    %627 = vmatpush2.msra.mxu0 0.0
    %628 = vmatprep.subr.mxu0 0.0
    %629 = vmatpush2.msra.mxu0 0.0
    %630 = vmatprep.subr.mxu0 0.0
    %631 = vmatpush2.msra.mxu0 0.0
    %632 = vmatprep.subr.mxu0 0.0
    %633 = vmatpush2.msra.mxu0 0.0
    %634 = vmatprep.subr.mxu0 0.0
    %635 = vmatpush2.msra.mxu0 0.0
    %636 = vmatprep.subr.mxu0 0.0
    %637 = vmatpush2.msra.mxu0 0.0
    %638 = vmatprep.subr.mxu0 0.0
    %639 = vmatpush2.msra.mxu0 0.0
    %640 = vmatprep.subr.mxu0 0.0
    %641 = vmatpush2.msra.mxu0 0.0
    %642 = vmatprep.mubr.f32.mxu0 0.0
    %643 = vmatmul.mubr.f32.gmra.mxu0 %v576
    %v644 = vpop.f32.mrf.mxu0
    %v645 = vadd.f32 0.0, %v644
    %v646 = vpop.f32.mrf.mxu0
    %647 = vdwg.mxu0
    %v648 = vadd.f32 %v572, %v645
    %s649 = scalar_lea.vmem %s0, 8
    %v650 = vld [vmem:[%s649] sm:$0x3]
    %v652 = vsel %vm53, %v650, 0
    %654 = vmatprep.subr.mxu0 0.0
    %655 = vmatpush1.msra.mxu0 0.0
    %656 = vmatprep.subr.mxu0 0.0
    %657 = vmatpush1.msra.mxu0 0.0
    %658 = vmatprep.subr.mxu0 0.0
    %659 = vmatpush1.msra.mxu0 0.0
    %660 = vmatprep.subr.mxu0 0.0
    %661 = vmatpush1.msra.mxu0 0.0
    %662 = vmatprep.subr.mxu0 0.0
    %663 = vmatpush1.msra.mxu0 0.0
    %664 = vmatprep.subr.mxu0 0.0
    %665 = vmatpush1.msra.mxu0 0.0
    %666 = vmatprep.subr.mxu0 0.0
    %667 = vmatpush1.msra.mxu0 0.0
    %668 = vmatprep.subr.mxu0 0.0
    %669 = vmatpush1.msra.mxu0 0.0
    %670 = vmatprep.subr.mxu0 0.0
    %671 = vmatpush1.msra.mxu0 0.0
    %672 = vmatprep.subr.mxu0 0.0
    %673 = vmatpush1.msra.mxu0 0.0
    %674 = vmatprep.subr.mxu0 0.0
    %675 = vmatpush1.msra.mxu0 0.0
    %676 = vmatprep.subr.mxu0 0.0
    %677 = vmatpush1.msra.mxu0 0.0
    %678 = vmatprep.subr.mxu0 0.0
    %679 = vmatpush1.msra.mxu0 0.0
    %680 = vmatprep.subr.mxu0 0.0
    %681 = vmatpush1.msra.mxu0 0.0
    %682 = vmatprep.subr.mxu0 0.0
    %683 = vmatpush1.msra.mxu0 0.0
    %684 = vmatprep.subr.mxu0 0.0
    %685 = vmatpush1.msra.mxu0 %v36
    %686 = vmatprep.subr.mxu0 0.0
    %687 = vmatpush2.msra.mxu0 0.0
    %688 = vmatprep.subr.mxu0 0.0
    %689 = vmatpush2.msra.mxu0 0.0
    %690 = vmatprep.subr.mxu0 0.0
    %691 = vmatpush2.msra.mxu0 0.0
    %692 = vmatprep.subr.mxu0 0.0
    %693 = vmatpush2.msra.mxu0 0.0
    %694 = vmatprep.subr.mxu0 0.0
    %695 = vmatpush2.msra.mxu0 0.0
    %696 = vmatprep.subr.mxu0 0.0
    %697 = vmatpush2.msra.mxu0 0.0
    %698 = vmatprep.subr.mxu0 0.0
    %699 = vmatpush2.msra.mxu0 0.0
    %700 = vmatprep.subr.mxu0 0.0
    %701 = vmatpush2.msra.mxu0 0.0
    %702 = vmatprep.subr.mxu0 0.0
    %703 = vmatpush2.msra.mxu0 0.0
    %704 = vmatprep.subr.mxu0 0.0
    %705 = vmatpush2.msra.mxu0 0.0
    %706 = vmatprep.subr.mxu0 0.0
    %707 = vmatpush2.msra.mxu0 0.0
    %708 = vmatprep.subr.mxu0 0.0
    %709 = vmatpush2.msra.mxu0 0.0
    %710 = vmatprep.subr.mxu0 0.0
    %711 = vmatpush2.msra.mxu0 0.0
    %712 = vmatprep.subr.mxu0 0.0
    %713 = vmatpush2.msra.mxu0 0.0
    %714 = vmatprep.subr.mxu0 0.0
    %715 = vmatpush2.msra.mxu0 0.0
    %716 = vmatprep.subr.mxu0 0.0
    %717 = vmatpush2.msra.mxu0 0.0
    %718 = vmatprep.mubr.f32.mxu0 0.0
    %719 = vmatmul.mubr.f32.gmra.mxu0 %v652
    %v720 = vpop.f32.mrf.mxu0
    %v721 = vadd.f32 %v50, %v720
    %v722 = vpop.f32.mrf.mxu0
    %723 = vdwg.mxu0
    %v725 = vsel %vm127, %v648, 0
    %727 = vmatprep.subr.mxu0 0.0
    %728 = vmatpush1.msra.mxu0 0.0
    %729 = vmatprep.subr.mxu0 0.0
    %730 = vmatpush1.msra.mxu0 0.0
    %731 = vmatprep.subr.mxu0 0.0
    %732 = vmatpush1.msra.mxu0 0.0
    %733 = vmatprep.subr.mxu0 0.0
    %734 = vmatpush1.msra.mxu0 0.0
    %735 = vmatprep.subr.mxu0 0.0
    %736 = vmatpush1.msra.mxu0 0.0
    %737 = vmatprep.subr.mxu0 0.0
    %738 = vmatpush1.msra.mxu0 0.0
    %739 = vmatprep.subr.mxu0 0.0
    %740 = vmatpush1.msra.mxu0 0.0
    %741 = vmatprep.subr.mxu0 0.0
    %742 = vmatpush1.msra.mxu0 0.0
    %743 = vmatprep.subr.mxu0 0.0
    %744 = vmatpush1.msra.mxu0 %v44
    %745 = vmatprep.subr.mxu0 0.0
    %746 = vmatpush1.msra.mxu0 %v43
    %747 = vmatprep.subr.mxu0 0.0
    %748 = vmatpush1.msra.mxu0 %v42
    %749 = vmatprep.subr.mxu0 0.0
    %750 = vmatpush1.msra.mxu0 %v41
    %751 = vmatprep.subr.mxu0 0.0
    %752 = vmatpush1.msra.mxu0 %v40
    %753 = vmatprep.subr.mxu0 0.0
    %754 = vmatpush1.msra.mxu0 %v39
    %755 = vmatprep.subr.mxu0 0.0
    %756 = vmatpush1.msra.mxu0 %v38
    %757 = vmatprep.subr.mxu0 0.0
    %758 = vmatpush1.msra.mxu0 %v37
    %759 = vmatprep.subr.mxu0 0.0
    %760 = vmatpush2.msra.mxu0 0.0
    %761 = vmatprep.subr.mxu0 0.0
    %762 = vmatpush2.msra.mxu0 0.0
    %763 = vmatprep.subr.mxu0 0.0
    %764 = vmatpush2.msra.mxu0 0.0
    %765 = vmatprep.subr.mxu0 0.0
    %766 = vmatpush2.msra.mxu0 0.0
    %767 = vmatprep.subr.mxu0 0.0
    %768 = vmatpush2.msra.mxu0 0.0
    %769 = vmatprep.subr.mxu0 0.0
    %770 = vmatpush2.msra.mxu0 0.0
    %771 = vmatprep.subr.mxu0 0.0
    %772 = vmatpush2.msra.mxu0 0.0
    %773 = vmatprep.subr.mxu0 0.0
    %774 = vmatpush2.msra.mxu0 0.0
    %775 = vmatprep.subr.mxu0 0.0
    %776 = vmatpush2.msra.mxu0 0.0
    %777 = vmatprep.subr.mxu0 0.0
    %778 = vmatpush2.msra.mxu0 0.0
    %779 = vmatprep.subr.mxu0 0.0
    %780 = vmatpush2.msra.mxu0 0.0
    %781 = vmatprep.subr.mxu0 0.0
    %782 = vmatpush2.msra.mxu0 0.0
    %783 = vmatprep.subr.mxu0 0.0
    %784 = vmatpush2.msra.mxu0 0.0
    %785 = vmatprep.subr.mxu0 0.0
    %786 = vmatpush2.msra.mxu0 0.0
    %787 = vmatprep.subr.mxu0 0.0
    %788 = vmatpush2.msra.mxu0 0.0
    %789 = vmatprep.subr.mxu0 0.0
    %790 = vmatpush2.msra.mxu0 0.0
    %791 = vmatprep.mubr.f32.mxu0 0.0
    %792 = vmatmul.mubr.f32.gmra.mxu0 %v725
    %v793 = vpop.f32.mrf.mxu0
    %v794 = vadd.f32 0.0, %v793
    %v795 = vpop.f32.mrf.mxu0
    %796 = vdwg.mxu0
    %v797 = vadd.f32 %v721, %v794
    %s798 = scalar_lea.vmem %s0, 10
    %v799 = vld [vmem:[%s798] sm:$0x3]
    %v801 = vsel %vm53, %v799, 0
    %803 = vmatprep.subr.mxu0 0.0
    %804 = vmatpush1.msra.mxu0 0.0
    %805 = vmatprep.subr.mxu0 0.0
    %806 = vmatpush1.msra.mxu0 0.0
    %807 = vmatprep.subr.mxu0 0.0
    %808 = vmatpush1.msra.mxu0 0.0
    %809 = vmatprep.subr.mxu0 0.0
    %810 = vmatpush1.msra.mxu0 0.0
    %811 = vmatprep.subr.mxu0 0.0
    %812 = vmatpush1.msra.mxu0 0.0
    %813 = vmatprep.subr.mxu0 0.0
    %814 = vmatpush1.msra.mxu0 0.0
    %815 = vmatprep.subr.mxu0 0.0
    %816 = vmatpush1.msra.mxu0 0.0
    %817 = vmatprep.subr.mxu0 0.0
    %818 = vmatpush1.msra.mxu0 0.0
    %819 = vmatprep.subr.mxu0 0.0
    %820 = vmatpush1.msra.mxu0 0.0
    %821 = vmatprep.subr.mxu0 0.0
    %822 = vmatpush1.msra.mxu0 0.0
    %823 = vmatprep.subr.mxu0 0.0
    %824 = vmatpush1.msra.mxu0 0.0
    %825 = vmatprep.subr.mxu0 0.0
    %826 = vmatpush1.msra.mxu0 0.0
    %827 = vmatprep.subr.mxu0 0.0
    %828 = vmatpush1.msra.mxu0 0.0
    %829 = vmatprep.subr.mxu0 0.0
    %830 = vmatpush1.msra.mxu0 0.0
    %831 = vmatprep.subr.mxu0 0.0
    %832 = vmatpush1.msra.mxu0 0.0
    %833 = vmatprep.subr.mxu0 0.0
    %834 = vmatpush1.msra.mxu0 %v36
    %835 = vmatprep.subr.mxu0 0.0
    %836 = vmatpush2.msra.mxu0 0.0
    %837 = vmatprep.subr.mxu0 0.0
    %838 = vmatpush2.msra.mxu0 0.0
    %839 = vmatprep.subr.mxu0 0.0
    %840 = vmatpush2.msra.mxu0 0.0
    %841 = vmatprep.subr.mxu0 0.0
    %842 = vmatpush2.msra.mxu0 0.0
    %843 = vmatprep.subr.mxu0 0.0
    %844 = vmatpush2.msra.mxu0 0.0
    %845 = vmatprep.subr.mxu0 0.0
    %846 = vmatpush2.msra.mxu0 0.0
    %847 = vmatprep.subr.mxu0 0.0
    %848 = vmatpush2.msra.mxu0 0.0
    %849 = vmatprep.subr.mxu0 0.0
    %850 = vmatpush2.msra.mxu0 0.0
    %851 = vmatprep.subr.mxu0 0.0
    %852 = vmatpush2.msra.mxu0 0.0
    %853 = vmatprep.subr.mxu0 0.0
    %854 = vmatpush2.msra.mxu0 0.0
    %855 = vmatprep.subr.mxu0 0.0
    %856 = vmatpush2.msra.mxu0 0.0
    %857 = vmatprep.subr.mxu0 0.0
    %858 = vmatpush2.msra.mxu0 0.0
    %859 = vmatprep.subr.mxu0 0.0
    %860 = vmatpush2.msra.mxu0 0.0
    %861 = vmatprep.subr.mxu0 0.0
    %862 = vmatpush2.msra.mxu0 0.0
    %863 = vmatprep.subr.mxu0 0.0
    %864 = vmatpush2.msra.mxu0 0.0
    %865 = vmatprep.subr.mxu0 0.0
    %866 = vmatpush2.msra.mxu0 0.0
    %867 = vmatprep.mubr.f32.mxu0 0.0
    %868 = vmatmul.mubr.f32.gmra.mxu0 %v801
    %v869 = vpop.f32.mrf.mxu0
    %v870 = vadd.f32 %v50, %v869
    %v871 = vpop.f32.mrf.mxu0
    %872 = vdwg.mxu0
    %v874 = vsel %vm127, %v797, 0
    %876 = vmatprep.subr.mxu0 0.0
    %877 = vmatpush1.msra.mxu0 0.0
    %878 = vmatprep.subr.mxu0 0.0
    %879 = vmatpush1.msra.mxu0 0.0
    %880 = vmatprep.subr.mxu0 0.0
    %881 = vmatpush1.msra.mxu0 0.0
    %882 = vmatprep.subr.mxu0 0.0
    %883 = vmatpush1.msra.mxu0 0.0
    %884 = vmatprep.subr.mxu0 0.0
    %885 = vmatpush1.msra.mxu0 0.0
    %886 = vmatprep.subr.mxu0 0.0
    %887 = vmatpush1.msra.mxu0 0.0
    %888 = vmatprep.subr.mxu0 0.0
    %889 = vmatpush1.msra.mxu0 0.0
    %890 = vmatprep.subr.mxu0 0.0
    %891 = vmatpush1.msra.mxu0 0.0
    %892 = vmatprep.subr.mxu0 0.0
    %893 = vmatpush1.msra.mxu0 %v44
    %894 = vmatprep.subr.mxu0 0.0
    %895 = vmatpush1.msra.mxu0 %v43
    %896 = vmatprep.subr.mxu0 0.0
    %897 = vmatpush1.msra.mxu0 %v42
    %898 = vmatprep.subr.mxu0 0.0
    %899 = vmatpush1.msra.mxu0 %v41
    %900 = vmatprep.subr.mxu0 0.0
    %901 = vmatpush1.msra.mxu0 %v40
    %902 = vmatprep.subr.mxu0 0.0
    %903 = vmatpush1.msra.mxu0 %v39
    %904 = vmatprep.subr.mxu0 0.0
    %905 = vmatpush1.msra.mxu0 %v38
    %906 = vmatprep.subr.mxu0 0.0
    %907 = vmatpush1.msra.mxu0 %v37
    %908 = vmatprep.subr.mxu0 0.0
    %909 = vmatpush2.msra.mxu0 0.0
    %910 = vmatprep.subr.mxu0 0.0
    %911 = vmatpush2.msra.mxu0 0.0
    %912 = vmatprep.subr.mxu0 0.0
    %913 = vmatpush2.msra.mxu0 0.0
    %914 = vmatprep.subr.mxu0 0.0
    %915 = vmatpush2.msra.mxu0 0.0
    %916 = vmatprep.subr.mxu0 0.0
    %917 = vmatpush2.msra.mxu0 0.0
    %918 = vmatprep.subr.mxu0 0.0
    %919 = vmatpush2.msra.mxu0 0.0
    %920 = vmatprep.subr.mxu0 0.0
    %921 = vmatpush2.msra.mxu0 0.0
    %922 = vmatprep.subr.mxu0 0.0
    %923 = vmatpush2.msra.mxu0 0.0
    %924 = vmatprep.subr.mxu0 0.0
    %925 = vmatpush2.msra.mxu0 0.0
    %926 = vmatprep.subr.mxu0 0.0
    %927 = vmatpush2.msra.mxu0 0.0
    %928 = vmatprep.subr.mxu0 0.0
    %929 = vmatpush2.msra.mxu0 0.0
    %930 = vmatprep.subr.mxu0 0.0
    %931 = vmatpush2.msra.mxu0 0.0
    %932 = vmatprep.subr.mxu0 0.0
    %933 = vmatpush2.msra.mxu0 0.0
    %934 = vmatprep.subr.mxu0 0.0
    %935 = vmatpush2.msra.mxu0 0.0
    %936 = vmatprep.subr.mxu0 0.0
    %937 = vmatpush2.msra.mxu0 0.0
    %938 = vmatprep.subr.mxu0 0.0
    %939 = vmatpush2.msra.mxu0 0.0
    %940 = vmatprep.mubr.f32.mxu0 0.0
    %941 = vmatmul.mubr.f32.gmra.mxu0 %v874
    %v942 = vpop.f32.mrf.mxu0
    %v943 = vadd.f32 0.0, %v942
    %v944 = vpop.f32.mrf.mxu0
    %945 = vdwg.mxu0
    %v946 = vadd.f32 %v870, %v943
    %s947 = scalar_lea.vmem %s0, 12
    %v948 = vld [vmem:[%s947] sm:$0x3]
    %v950 = vsel %vm53, %v948, 0
    %952 = vmatprep.subr.mxu0 0.0
    %953 = vmatpush1.msra.mxu0 0.0
    %954 = vmatprep.subr.mxu0 0.0
    %955 = vmatpush1.msra.mxu0 0.0
    %956 = vmatprep.subr.mxu0 0.0
    %957 = vmatpush1.msra.mxu0 0.0
    %958 = vmatprep.subr.mxu0 0.0
    %959 = vmatpush1.msra.mxu0 0.0
    %960 = vmatprep.subr.mxu0 0.0
    %961 = vmatpush1.msra.mxu0 0.0
    %962 = vmatprep.subr.mxu0 0.0
    %963 = vmatpush1.msra.mxu0 0.0
    %964 = vmatprep.subr.mxu0 0.0
    %965 = vmatpush1.msra.mxu0 0.0
    %966 = vmatprep.subr.mxu0 0.0
    %967 = vmatpush1.msra.mxu0 0.0
    %968 = vmatprep.subr.mxu0 0.0
    %969 = vmatpush1.msra.mxu0 0.0
    %970 = vmatprep.subr.mxu0 0.0
    %971 = vmatpush1.msra.mxu0 0.0
    %972 = vmatprep.subr.mxu0 0.0
    %973 = vmatpush1.msra.mxu0 0.0
    %974 = vmatprep.subr.mxu0 0.0
    %975 = vmatpush1.msra.mxu0 0.0
    %976 = vmatprep.subr.mxu0 0.0
    %977 = vmatpush1.msra.mxu0 0.0
    %978 = vmatprep.subr.mxu0 0.0
    %979 = vmatpush1.msra.mxu0 0.0
    %980 = vmatprep.subr.mxu0 0.0
    %981 = vmatpush1.msra.mxu0 0.0
    %982 = vmatprep.subr.mxu0 0.0
    %983 = vmatpush1.msra.mxu0 %v36
    %984 = vmatprep.subr.mxu0 0.0
    %985 = vmatpush2.msra.mxu0 0.0
    %986 = vmatprep.subr.mxu0 0.0
    %987 = vmatpush2.msra.mxu0 0.0
    %988 = vmatprep.subr.mxu0 0.0
    %989 = vmatpush2.msra.mxu0 0.0
    %990 = vmatprep.subr.mxu0 0.0
    %991 = vmatpush2.msra.mxu0 0.0
    %992 = vmatprep.subr.mxu0 0.0
    %993 = vmatpush2.msra.mxu0 0.0
    %994 = vmatprep.subr.mxu0 0.0
    %995 = vmatpush2.msra.mxu0 0.0
    %996 = vmatprep.subr.mxu0 0.0
    %997 = vmatpush2.msra.mxu0 0.0
    %998 = vmatprep.subr.mxu0 0.0
    %999 = vmatpush2.msra.mxu0 0.0
    %1000 = vmatprep.subr.mxu0 0.0
    %1001 = vmatpush2.msra.mxu0 0.0
    %1002 = vmatprep.subr.mxu0 0.0
    %1003 = vmatpush2.msra.mxu0 0.0
    %1004 = vmatprep.subr.mxu0 0.0
    %1005 = vmatpush2.msra.mxu0 0.0
    %1006 = vmatprep.subr.mxu0 0.0
    %1007 = vmatpush2.msra.mxu0 0.0
    %1008 = vmatprep.subr.mxu0 0.0
    %1009 = vmatpush2.msra.mxu0 0.0
    %1010 = vmatprep.subr.mxu0 0.0
    %1011 = vmatpush2.msra.mxu0 0.0
    %1012 = vmatprep.subr.mxu0 0.0
    %1013 = vmatpush2.msra.mxu0 0.0
    %1014 = vmatprep.subr.mxu0 0.0
    %1015 = vmatpush2.msra.mxu0 0.0
    %1016 = vmatprep.mubr.f32.mxu0 0.0
    %1017 = vmatmul.mubr.f32.gmra.mxu0 %v950
    %v1018 = vpop.f32.mrf.mxu0
    %v1019 = vadd.f32 %v50, %v1018
    %v1020 = vpop.f32.mrf.mxu0
    %1021 = vdwg.mxu0
    %v1023 = vsel %vm127, %v946, 0
    %1025 = vmatprep.subr.mxu0 0.0
    %1026 = vmatpush1.msra.mxu0 0.0
    %1027 = vmatprep.subr.mxu0 0.0
    %1028 = vmatpush1.msra.mxu0 0.0
    %1029 = vmatprep.subr.mxu0 0.0
    %1030 = vmatpush1.msra.mxu0 0.0
    %1031 = vmatprep.subr.mxu0 0.0
    %1032 = vmatpush1.msra.mxu0 0.0
    %1033 = vmatprep.subr.mxu0 0.0
    %1034 = vmatpush1.msra.mxu0 0.0
    %1035 = vmatprep.subr.mxu0 0.0
    %1036 = vmatpush1.msra.mxu0 0.0
    %1037 = vmatprep.subr.mxu0 0.0
    %1038 = vmatpush1.msra.mxu0 0.0
    %1039 = vmatprep.subr.mxu0 0.0
    %1040 = vmatpush1.msra.mxu0 0.0
    %1041 = vmatprep.subr.mxu0 0.0
    %1042 = vmatpush1.msra.mxu0 %v44
    %1043 = vmatprep.subr.mxu0 0.0
    %1044 = vmatpush1.msra.mxu0 %v43
    %1045 = vmatprep.subr.mxu0 0.0
    %1046 = vmatpush1.msra.mxu0 %v42
    %1047 = vmatprep.subr.mxu0 0.0
    %1048 = vmatpush1.msra.mxu0 %v41
    %1049 = vmatprep.subr.mxu0 0.0
    %1050 = vmatpush1.msra.mxu0 %v40
    %1051 = vmatprep.subr.mxu0 0.0
    %1052 = vmatpush1.msra.mxu0 %v39
    %1053 = vmatprep.subr.mxu0 0.0
    %1054 = vmatpush1.msra.mxu0 %v38
    %1055 = vmatprep.subr.mxu0 0.0
    %1056 = vmatpush1.msra.mxu0 %v37
    %1057 = vmatprep.subr.mxu0 0.0
    %1058 = vmatpush2.msra.mxu0 0.0
    %1059 = vmatprep.subr.mxu0 0.0
    %1060 = vmatpush2.msra.mxu0 0.0
    %1061 = vmatprep.subr.mxu0 0.0
    %1062 = vmatpush2.msra.mxu0 0.0
    %1063 = vmatprep.subr.mxu0 0.0
    %1064 = vmatpush2.msra.mxu0 0.0
    %1065 = vmatprep.subr.mxu0 0.0
    %1066 = vmatpush2.msra.mxu0 0.0
    %1067 = vmatprep.subr.mxu0 0.0
    %1068 = vmatpush2.msra.mxu0 0.0
    %1069 = vmatprep.subr.mxu0 0.0
    %1070 = vmatpush2.msra.mxu0 0.0
    %1071 = vmatprep.subr.mxu0 0.0
    %1072 = vmatpush2.msra.mxu0 0.0
    %1073 = vmatprep.subr.mxu0 0.0
    %1074 = vmatpush2.msra.mxu0 0.0
    %1075 = vmatprep.subr.mxu0 0.0
    %1076 = vmatpush2.msra.mxu0 0.0
    %1077 = vmatprep.subr.mxu0 0.0
    %1078 = vmatpush2.msra.mxu0 0.0
    %1079 = vmatprep.subr.mxu0 0.0
    %1080 = vmatpush2.msra.mxu0 0.0
    %1081 = vmatprep.subr.mxu0 0.0
    %1082 = vmatpush2.msra.mxu0 0.0
    %1083 = vmatprep.subr.mxu0 0.0
    %1084 = vmatpush2.msra.mxu0 0.0
    %1085 = vmatprep.subr.mxu0 0.0
    %1086 = vmatpush2.msra.mxu0 0.0
    %1087 = vmatprep.subr.mxu0 0.0
    %1088 = vmatpush2.msra.mxu0 0.0
    %1089 = vmatprep.mubr.f32.mxu0 0.0
    %1090 = vmatmul.mubr.f32.gmra.mxu0 %v1023
    %v1091 = vpop.f32.mrf.mxu0
    %v1092 = vadd.f32 0.0, %v1091
    %v1093 = vpop.f32.mrf.mxu0
    %1094 = vdwg.mxu0
    %v1095 = vadd.f32 %v1019, %v1092
    %s1096 = scalar_lea.vmem %s0, 14
    %v1097 = vld [vmem:[%s1096] sm:$0x3]
    %v1099 = vsel %vm53, %v1097, 0
    %1101 = vmatprep.subr.mxu0 0.0
    %1102 = vmatpush1.msra.mxu0 0.0
    %1103 = vmatprep.subr.mxu0 0.0
    %1104 = vmatpush1.msra.mxu0 0.0
    %1105 = vmatprep.subr.mxu0 0.0
    %1106 = vmatpush1.msra.mxu0 0.0
    %1107 = vmatprep.subr.mxu0 0.0
    %1108 = vmatpush1.msra.mxu0 0.0
    %1109 = vmatprep.subr.mxu0 0.0
    %1110 = vmatpush1.msra.mxu0 0.0
    %1111 = vmatprep.subr.mxu0 0.0
    %1112 = vmatpush1.msra.mxu0 0.0
    %1113 = vmatprep.subr.mxu0 0.0
    %1114 = vmatpush1.msra.mxu0 0.0
    %1115 = vmatprep.subr.mxu0 0.0
    %1116 = vmatpush1.msra.mxu0 0.0
    %1117 = vmatprep.subr.mxu0 0.0
    %1118 = vmatpush1.msra.mxu0 0.0
    %1119 = vmatprep.subr.mxu0 0.0
    %1120 = vmatpush1.msra.mxu0 0.0
    %1121 = vmatprep.subr.mxu0 0.0
    %1122 = vmatpush1.msra.mxu0 0.0
    %1123 = vmatprep.subr.mxu0 0.0
    %1124 = vmatpush1.msra.mxu0 0.0
    %1125 = vmatprep.subr.mxu0 0.0
    %1126 = vmatpush1.msra.mxu0 0.0
    %1127 = vmatprep.subr.mxu0 0.0
    %1128 = vmatpush1.msra.mxu0 0.0
    %1129 = vmatprep.subr.mxu0 0.0
    %1130 = vmatpush1.msra.mxu0 0.0
    %1131 = vmatprep.subr.mxu0 0.0
    %1132 = vmatpush1.msra.mxu0 %v36
    %1133 = vmatprep.subr.mxu0 0.0
    %1134 = vmatpush2.msra.mxu0 0.0
    %1135 = vmatprep.subr.mxu0 0.0
    %1136 = vmatpush2.msra.mxu0 0.0
    %1137 = vmatprep.subr.mxu0 0.0
    %1138 = vmatpush2.msra.mxu0 0.0
    %1139 = vmatprep.subr.mxu0 0.0
    %1140 = vmatpush2.msra.mxu0 0.0
    %1141 = vmatprep.subr.mxu0 0.0
    %1142 = vmatpush2.msra.mxu0 0.0
    %1143 = vmatprep.subr.mxu0 0.0
    %1144 = vmatpush2.msra.mxu0 0.0
    %1145 = vmatprep.subr.mxu0 0.0
    %1146 = vmatpush2.msra.mxu0 0.0
    %1147 = vmatprep.subr.mxu0 0.0
    %1148 = vmatpush2.msra.mxu0 0.0
    %1149 = vmatprep.subr.mxu0 0.0
    %1150 = vmatpush2.msra.mxu0 0.0
    %1151 = vmatprep.subr.mxu0 0.0
    %1152 = vmatpush2.msra.mxu0 0.0
    %1153 = vmatprep.subr.mxu0 0.0
    %1154 = vmatpush2.msra.mxu0 0.0
    %1155 = vmatprep.subr.mxu0 0.0
    %1156 = vmatpush2.msra.mxu0 0.0
    %1157 = vmatprep.subr.mxu0 0.0
    %1158 = vmatpush2.msra.mxu0 0.0
    %1159 = vmatprep.subr.mxu0 0.0
    %1160 = vmatpush2.msra.mxu0 0.0
    %1161 = vmatprep.subr.mxu0 0.0
    %1162 = vmatpush2.msra.mxu0 0.0
    %1163 = vmatprep.subr.mxu0 0.0
    %1164 = vmatpush2.msra.mxu0 0.0
    %1165 = vmatprep.mubr.f32.mxu0 0.0
    %1166 = vmatmul.mubr.f32.gmra.mxu0 %v1099
    %v1167 = vpop.f32.mrf.mxu0
    %v1168 = vadd.f32 %v50, %v1167
    %v1169 = vpop.f32.mrf.mxu0
    %1170 = vdwg.mxu0
    %v1172 = vsel %vm127, %v1095, 0
    %1174 = vmatprep.subr.mxu0 0.0
    %1175 = vmatpush1.msra.mxu0 0.0
    %1176 = vmatprep.subr.mxu0 0.0
    %1177 = vmatpush1.msra.mxu0 0.0
    %1178 = vmatprep.subr.mxu0 0.0
    %1179 = vmatpush1.msra.mxu0 0.0
    %1180 = vmatprep.subr.mxu0 0.0
    %1181 = vmatpush1.msra.mxu0 0.0
    %1182 = vmatprep.subr.mxu0 0.0
    %1183 = vmatpush1.msra.mxu0 0.0
    %1184 = vmatprep.subr.mxu0 0.0
    %1185 = vmatpush1.msra.mxu0 0.0
    %1186 = vmatprep.subr.mxu0 0.0
    %1187 = vmatpush1.msra.mxu0 0.0
    %1188 = vmatprep.subr.mxu0 0.0
    %1189 = vmatpush1.msra.mxu0 0.0
    %1190 = vmatprep.subr.mxu0 0.0
    %1191 = vmatpush1.msra.mxu0 %v44
    %1192 = vmatprep.subr.mxu0 0.0
    %1193 = vmatpush1.msra.mxu0 %v43
    %1194 = vmatprep.subr.mxu0 0.0
    %1195 = vmatpush1.msra.mxu0 %v42
    %1196 = vmatprep.subr.mxu0 0.0
    %1197 = vmatpush1.msra.mxu0 %v41
    %1198 = vmatprep.subr.mxu0 0.0
    %1199 = vmatpush1.msra.mxu0 %v40
    %1200 = vmatprep.subr.mxu0 0.0
    %1201 = vmatpush1.msra.mxu0 %v39
    %1202 = vmatprep.subr.mxu0 0.0
    %1203 = vmatpush1.msra.mxu0 %v38
    %1204 = vmatprep.subr.mxu0 0.0
    %1205 = vmatpush1.msra.mxu0 %v37
    %1206 = vmatprep.subr.mxu0 0.0
    %1207 = vmatpush2.msra.mxu0 0.0
    %1208 = vmatprep.subr.mxu0 0.0
    %1209 = vmatpush2.msra.mxu0 0.0
    %1210 = vmatprep.subr.mxu0 0.0
    %1211 = vmatpush2.msra.mxu0 0.0
    %1212 = vmatprep.subr.mxu0 0.0
    %1213 = vmatpush2.msra.mxu0 0.0
    %1214 = vmatprep.subr.mxu0 0.0
    %1215 = vmatpush2.msra.mxu0 0.0
    %1216 = vmatprep.subr.mxu0 0.0
    %1217 = vmatpush2.msra.mxu0 0.0
    %1218 = vmatprep.subr.mxu0 0.0
    %1219 = vmatpush2.msra.mxu0 0.0
    %1220 = vmatprep.subr.mxu0 0.0
    %1221 = vmatpush2.msra.mxu0 0.0
    %1222 = vmatprep.subr.mxu0 0.0
    %1223 = vmatpush2.msra.mxu0 0.0
    %1224 = vmatprep.subr.mxu0 0.0
    %1225 = vmatpush2.msra.mxu0 0.0
    %1226 = vmatprep.subr.mxu0 0.0
    %1227 = vmatpush2.msra.mxu0 0.0
    %1228 = vmatprep.subr.mxu0 0.0
    %1229 = vmatpush2.msra.mxu0 0.0
    %1230 = vmatprep.subr.mxu0 0.0
    %1231 = vmatpush2.msra.mxu0 0.0
    %1232 = vmatprep.subr.mxu0 0.0
    %1233 = vmatpush2.msra.mxu0 0.0
    %1234 = vmatprep.subr.mxu0 0.0
    %1235 = vmatpush2.msra.mxu0 0.0
    %1236 = vmatprep.subr.mxu0 0.0
    %1237 = vmatpush2.msra.mxu0 0.0
    %1238 = vmatprep.mubr.f32.mxu0 0.0
    %1239 = vmatmul.mubr.f32.gmra.mxu0 %v1172
    %v1240 = vpop.f32.mrf.mxu0
    %v1241 = vadd.f32 0.0, %v1240
    %v1242 = vpop.f32.mrf.mxu0
    %1243 = vdwg.mxu0
    %v1244 = vadd.f32 %v1168, %v1241
    %v1245 = vld [vmem:[%s4] sm:$0xff]
    %v1246 = vld [vmem:[%s4 + $0x8] sm:$0xff]
    %v1247 = vld [vmem:[%s4 + $0x10] sm:$0xff]
    %v1248 = vld [vmem:[%s4 + $0x18] sm:$0xff]
    %v1249 = vld [vmem:[%s4 + $0x20] sm:$0xff]
    %v1250 = vld [vmem:[%s4 + $0x28] sm:$0xff]
    %v1251 = vld [vmem:[%s4 + $0x30] sm:$0xff]
    %v1252 = vld [vmem:[%s4 + $0x38] sm:$0xff]
    %v1253 = vld [vmem:[%s5] sm:$0x1]
    %v1255 = vlaneseq
    %v1256 = vshrl.u32 %v1255, 7
    %v1257 = vsub.s32 0, %v1256
    %v1258 = vrot.slane %v1253, %v1257
    %1260 = vmatprep.subr.mxu0 0.0
    %1261 = vmatpush1.msra.mxu0 0.0
    %1262 = vmatprep.subr.mxu0 0.0
    %1263 = vmatpush1.msra.mxu0 0.0
    %1264 = vmatprep.subr.mxu0 0.0
    %1265 = vmatpush1.msra.mxu0 0.0
    %1266 = vmatprep.subr.mxu0 0.0
    %1267 = vmatpush1.msra.mxu0 0.0
    %1268 = vmatprep.subr.mxu0 0.0
    %1269 = vmatpush1.msra.mxu0 0.0
    %1270 = vmatprep.subr.mxu0 0.0
    %1271 = vmatpush1.msra.mxu0 0.0
    %1272 = vmatprep.subr.mxu0 0.0
    %1273 = vmatpush1.msra.mxu0 0.0
    %1274 = vmatprep.subr.mxu0 0.0
    %1275 = vmatpush1.msra.mxu0 0.0
    %1276 = vmatprep.subr.mxu0 0.0
    %1277 = vmatpush1.msra.mxu0 %v1252
    %1278 = vmatprep.subr.mxu0 0.0
    %1279 = vmatpush1.msra.mxu0 %v1251
    %1280 = vmatprep.subr.mxu0 0.0
    %1281 = vmatpush1.msra.mxu0 %v1250
    %1282 = vmatprep.subr.mxu0 0.0
    %1283 = vmatpush1.msra.mxu0 %v1249
    %1284 = vmatprep.subr.mxu0 0.0
    %1285 = vmatpush1.msra.mxu0 %v1248
    %1286 = vmatprep.subr.mxu0 0.0
    %1287 = vmatpush1.msra.mxu0 %v1247
    %1288 = vmatprep.subr.mxu0 0.0
    %1289 = vmatpush1.msra.mxu0 %v1246
    %1290 = vmatprep.subr.mxu0 0.0
    %1291 = vmatpush1.msra.mxu0 %v1245
    %1292 = vmatprep.subr.mxu0 0.0
    %1293 = vmatpush2.msra.mxu0 0.0
    %1294 = vmatprep.subr.mxu0 0.0
    %1295 = vmatpush2.msra.mxu0 0.0
    %1296 = vmatprep.subr.mxu0 0.0
    %1297 = vmatpush2.msra.mxu0 0.0
    %1298 = vmatprep.subr.mxu0 0.0
    %1299 = vmatpush2.msra.mxu0 0.0
    %1300 = vmatprep.subr.mxu0 0.0
    %1301 = vmatpush2.msra.mxu0 0.0
    %1302 = vmatprep.subr.mxu0 0.0
    %1303 = vmatpush2.msra.mxu0 0.0
    %1304 = vmatprep.subr.mxu0 0.0
    %1305 = vmatpush2.msra.mxu0 0.0
    %1306 = vmatprep.subr.mxu0 0.0
    %1307 = vmatpush2.msra.mxu0 0.0
    %1308 = vmatprep.subr.mxu0 0.0
    %1309 = vmatpush2.msra.mxu0 0.0
    %1310 = vmatprep.subr.mxu0 0.0
    %1311 = vmatpush2.msra.mxu0 0.0
    %1312 = vmatprep.subr.mxu0 0.0
    %1313 = vmatpush2.msra.mxu0 0.0
    %1314 = vmatprep.subr.mxu0 0.0
    %1315 = vmatpush2.msra.mxu0 0.0
    %1316 = vmatprep.subr.mxu0 0.0
    %1317 = vmatpush2.msra.mxu0 0.0
    %1318 = vmatprep.subr.mxu0 0.0
    %1319 = vmatpush2.msra.mxu0 0.0
    %1320 = vmatprep.subr.mxu0 0.0
    %1321 = vmatpush2.msra.mxu0 0.0
    %1322 = vmatprep.subr.mxu0 0.0
    %1323 = vmatpush2.msra.mxu0 0.0
    %1324 = vmatprep.mubr.f32.mxu0 0.0
    %1325 = vmatmul.mubr.f32.gmra.mxu0 %v874
    %v1326 = vpop.f32.mrf.mxu0
    %v1327 = vadd.f32 %v1258, %v1326
    %v1328 = vpop.f32.mrf.mxu0
    %1329 = vdwg.mxu0
    %vm1330 = vcmask 123904
    %1331 = vst.msk [vmem:[#allocation5] sm:$0x3] %vm1330, %v1327
    %1332 = vmatprep.subr.mxu0 0.0
    %1333 = vmatpush1.msra.mxu0 0.0
    %1334 = vmatprep.subr.mxu0 0.0
    %1335 = vmatpush1.msra.mxu0 0.0
    %1336 = vmatprep.subr.mxu0 0.0
    %1337 = vmatpush1.msra.mxu0 0.0
    %1338 = vmatprep.subr.mxu0 0.0
    %1339 = vmatpush1.msra.mxu0 0.0
    %1340 = vmatprep.subr.mxu0 0.0
    %1341 = vmatpush1.msra.mxu0 0.0
    %1342 = vmatprep.subr.mxu0 0.0
    %1343 = vmatpush1.msra.mxu0 0.0
    %1344 = vmatprep.subr.mxu0 0.0
    %1345 = vmatpush1.msra.mxu0 0.0
    %1346 = vmatprep.subr.mxu0 0.0
    %1347 = vmatpush1.msra.mxu0 0.0
    %1348 = vmatprep.subr.mxu0 0.0
    %1349 = vmatpush1.msra.mxu0 %v1252
    %1350 = vmatprep.subr.mxu0 0.0
    %1351 = vmatpush1.msra.mxu0 %v1251
    %1352 = vmatprep.subr.mxu0 0.0
    %1353 = vmatpush1.msra.mxu0 %v1250
    %1354 = vmatprep.subr.mxu0 0.0
    %1355 = vmatpush1.msra.mxu0 %v1249
    %1356 = vmatprep.subr.mxu0 0.0
    %1357 = vmatpush1.msra.mxu0 %v1248
    %1358 = vmatprep.subr.mxu0 0.0
    %1359 = vmatpush1.msra.mxu0 %v1247
    %1360 = vmatprep.subr.mxu0 0.0
    %1361 = vmatpush1.msra.mxu0 %v1246
    %1362 = vmatprep.subr.mxu0 0.0
    %1363 = vmatpush1.msra.mxu0 %v1245
    %1364 = vmatprep.subr.mxu0 0.0
    %1365 = vmatpush2.msra.mxu0 0.0
    %1366 = vmatprep.subr.mxu0 0.0
    %1367 = vmatpush2.msra.mxu0 0.0
    %1368 = vmatprep.subr.mxu0 0.0
    %1369 = vmatpush2.msra.mxu0 0.0
    %1370 = vmatprep.subr.mxu0 0.0
    %1371 = vmatpush2.msra.mxu0 0.0
    %1372 = vmatprep.subr.mxu0 0.0
    %1373 = vmatpush2.msra.mxu0 0.0
    %1374 = vmatprep.subr.mxu0 0.0
    %1375 = vmatpush2.msra.mxu0 0.0
    %1376 = vmatprep.subr.mxu0 0.0
    %1377 = vmatpush2.msra.mxu0 0.0
    %1378 = vmatprep.subr.mxu0 0.0
    %1379 = vmatpush2.msra.mxu0 0.0
    %1380 = vmatprep.subr.mxu0 0.0
    %1381 = vmatpush2.msra.mxu0 0.0
    %1382 = vmatprep.subr.mxu0 0.0
    %1383 = vmatpush2.msra.mxu0 0.0
    %1384 = vmatprep.subr.mxu0 0.0
    %1385 = vmatpush2.msra.mxu0 0.0
    %1386 = vmatprep.subr.mxu0 0.0
    %1387 = vmatpush2.msra.mxu0 0.0
    %1388 = vmatprep.subr.mxu0 0.0
    %1389 = vmatpush2.msra.mxu0 0.0
    %1390 = vmatprep.subr.mxu0 0.0
    %1391 = vmatpush2.msra.mxu0 0.0
    %1392 = vmatprep.subr.mxu0 0.0
    %1393 = vmatpush2.msra.mxu0 0.0
    %1394 = vmatprep.subr.mxu0 0.0
    %1395 = vmatpush2.msra.mxu0 0.0
    %1396 = vmatprep.mubr.f32.mxu0 0.0
    %1397 = vmatmul.mubr.f32.gmra.mxu0 %v1023
    %v1398 = vpop.f32.mrf.mxu0
    %v1399 = vadd.f32 %v1258, %v1398
    %v1400 = vpop.f32.mrf.mxu0
    %1401 = vdwg.mxu0
    %s1402 = scalar_lea.vmem [#allocation5], 2
    %1403 = vst.msk [vmem:[%s1402] sm:$0x3] %vm1330, %v1399
    %1404 = vmatprep.subr.mxu0 0.0
    %1405 = vmatpush1.msra.mxu0 0.0
    %1406 = vmatprep.subr.mxu0 0.0
    %1407 = vmatpush1.msra.mxu0 0.0
    %1408 = vmatprep.subr.mxu0 0.0
    %1409 = vmatpush1.msra.mxu0 0.0
    %1410 = vmatprep.subr.mxu0 0.0
    %1411 = vmatpush1.msra.mxu0 0.0
    %1412 = vmatprep.subr.mxu0 0.0
    %1413 = vmatpush1.msra.mxu0 0.0
    %1414 = vmatprep.subr.mxu0 0.0
    %1415 = vmatpush1.msra.mxu0 0.0
    %1416 = vmatprep.subr.mxu0 0.0
    %1417 = vmatpush1.msra.mxu0 0.0
    %1418 = vmatprep.subr.mxu0 0.0
    %1419 = vmatpush1.msra.mxu0 0.0
    %1420 = vmatprep.subr.mxu0 0.0
    %1421 = vmatpush1.msra.mxu0 %v1252
    %1422 = vmatprep.subr.mxu0 0.0
    %1423 = vmatpush1.msra.mxu0 %v1251
    %1424 = vmatprep.subr.mxu0 0.0
    %1425 = vmatpush1.msra.mxu0 %v1250
    %1426 = vmatprep.subr.mxu0 0.0
    %1427 = vmatpush1.msra.mxu0 %v1249
    %1428 = vmatprep.subr.mxu0 0.0
    %1429 = vmatpush1.msra.mxu0 %v1248
    %1430 = vmatprep.subr.mxu0 0.0
    %1431 = vmatpush1.msra.mxu0 %v1247
    %1432 = vmatprep.subr.mxu0 0.0
    %1433 = vmatpush1.msra.mxu0 %v1246
    %1434 = vmatprep.subr.mxu0 0.0
    %1435 = vmatpush1.msra.mxu0 %v1245
    %1436 = vmatprep.subr.mxu0 0.0
    %1437 = vmatpush2.msra.mxu0 0.0
    %1438 = vmatprep.subr.mxu0 0.0
    %1439 = vmatpush2.msra.mxu0 0.0
    %1440 = vmatprep.subr.mxu0 0.0
    %1441 = vmatpush2.msra.mxu0 0.0
    %1442 = vmatprep.subr.mxu0 0.0
    %1443 = vmatpush2.msra.mxu0 0.0
    %1444 = vmatprep.subr.mxu0 0.0
    %1445 = vmatpush2.msra.mxu0 0.0
    %1446 = vmatprep.subr.mxu0 0.0
    %1447 = vmatpush2.msra.mxu0 0.0
    %1448 = vmatprep.subr.mxu0 0.0
    %1449 = vmatpush2.msra.mxu0 0.0
    %1450 = vmatprep.subr.mxu0 0.0
    %1451 = vmatpush2.msra.mxu0 0.0
    %1452 = vmatprep.subr.mxu0 0.0
    %1453 = vmatpush2.msra.mxu0 0.0
    %1454 = vmatprep.subr.mxu0 0.0
    %1455 = vmatpush2.msra.mxu0 0.0
    %1456 = vmatprep.subr.mxu0 0.0
    %1457 = vmatpush2.msra.mxu0 0.0
    %1458 = vmatprep.subr.mxu0 0.0
    %1459 = vmatpush2.msra.mxu0 0.0
    %1460 = vmatprep.subr.mxu0 0.0
    %1461 = vmatpush2.msra.mxu0 0.0
    %1462 = vmatprep.subr.mxu0 0.0
    %1463 = vmatpush2.msra.mxu0 0.0
    %1464 = vmatprep.subr.mxu0 0.0
    %1465 = vmatpush2.msra.mxu0 0.0
    %1466 = vmatprep.subr.mxu0 0.0
    %1467 = vmatpush2.msra.mxu0 0.0
    %1468 = vmatprep.mubr.f32.mxu0 0.0
    %1469 = vmatmul.mubr.f32.gmra.mxu0 %v1172
    %v1470 = vpop.f32.mrf.mxu0
    %v1471 = vadd.f32 %v1258, %v1470
    %v1472 = vpop.f32.mrf.mxu0
    %1473 = vdwg.mxu0
    %s1474 = scalar_lea.vmem [#allocation5], 4
    %1475 = vst.msk [vmem:[%s1474] sm:$0x3] %vm1330, %v1471
    %v1477 = vsel %vm127, %v1244, 0
    %1479 = vmatprep.subr.mxu0 0.0
    %1480 = vmatpush1.msra.mxu0 0.0
    %1481 = vmatprep.subr.mxu0 0.0
    %1482 = vmatpush1.msra.mxu0 0.0
    %1483 = vmatprep.subr.mxu0 0.0
    %1484 = vmatpush1.msra.mxu0 0.0
    %1485 = vmatprep.subr.mxu0 0.0
    %1486 = vmatpush1.msra.mxu0 0.0
    %1487 = vmatprep.subr.mxu0 0.0
    %1488 = vmatpush1.msra.mxu0 0.0
    %1489 = vmatprep.subr.mxu0 0.0
    %1490 = vmatpush1.msra.mxu0 0.0
    %1491 = vmatprep.subr.mxu0 0.0
    %1492 = vmatpush1.msra.mxu0 0.0
    %1493 = vmatprep.subr.mxu0 0.0
    %1494 = vmatpush1.msra.mxu0 0.0
    %1495 = vmatprep.subr.mxu0 0.0
    %1496 = vmatpush1.msra.mxu0 %v1252
    %1497 = vmatprep.subr.mxu0 0.0
    %1498 = vmatpush1.msra.mxu0 %v1251
    %1499 = vmatprep.subr.mxu0 0.0
    %1500 = vmatpush1.msra.mxu0 %v1250
    %1501 = vmatprep.subr.mxu0 0.0
    %1502 = vmatpush1.msra.mxu0 %v1249
    %1503 = vmatprep.subr.mxu0 0.0
    %1504 = vmatpush1.msra.mxu0 %v1248
    %1505 = vmatprep.subr.mxu0 0.0
    %1506 = vmatpush1.msra.mxu0 %v1247
    %1507 = vmatprep.subr.mxu0 0.0
    %1508 = vmatpush1.msra.mxu0 %v1246
    %1509 = vmatprep.subr.mxu0 0.0
    %1510 = vmatpush1.msra.mxu0 %v1245
    %1511 = vmatprep.subr.mxu0 0.0
    %1512 = vmatpush2.msra.mxu0 0.0
    %1513 = vmatprep.subr.mxu0 0.0
    %1514 = vmatpush2.msra.mxu0 0.0
    %1515 = vmatprep.subr.mxu0 0.0
    %1516 = vmatpush2.msra.mxu0 0.0
    %1517 = vmatprep.subr.mxu0 0.0
    %1518 = vmatpush2.msra.mxu0 0.0
    %1519 = vmatprep.subr.mxu0 0.0
    %1520 = vmatpush2.msra.mxu0 0.0
    %1521 = vmatprep.subr.mxu0 0.0
    %1522 = vmatpush2.msra.mxu0 0.0
    %1523 = vmatprep.subr.mxu0 0.0
    %1524 = vmatpush2.msra.mxu0 0.0
    %1525 = vmatprep.subr.mxu0 0.0
    %1526 = vmatpush2.msra.mxu0 0.0
    %1527 = vmatprep.subr.mxu0 0.0
    %1528 = vmatpush2.msra.mxu0 0.0
    %1529 = vmatprep.subr.mxu0 0.0
    %1530 = vmatpush2.msra.mxu0 0.0
    %1531 = vmatprep.subr.mxu0 0.0
    %1532 = vmatpush2.msra.mxu0 0.0
    %1533 = vmatprep.subr.mxu0 0.0
    %1534 = vmatpush2.msra.mxu0 0.0
    %1535 = vmatprep.subr.mxu0 0.0
    %1536 = vmatpush2.msra.mxu0 0.0
    %1537 = vmatprep.subr.mxu0 0.0
    %1538 = vmatpush2.msra.mxu0 0.0
    %1539 = vmatprep.subr.mxu0 0.0
    %1540 = vmatpush2.msra.mxu0 0.0
    %1541 = vmatprep.subr.mxu0 0.0
    %1542 = vmatpush2.msra.mxu0 0.0
    %1543 = vmatprep.mubr.f32.mxu0 0.0
    %1544 = vmatmul.mubr.f32.gmra.mxu0 %v1477
    %v1545 = vpop.f32.mrf.mxu0
    %v1546 = vadd.f32 %v1258, %v1545
    %v1547 = vpop.f32.mrf.mxu0
    %1548 = vdwg.mxu0
    %s1549 = scalar_lea.vmem [#allocation5], 6
    %1550 = vst.msk [vmem:[%s1549] sm:$0x3] %vm1330, %v1546
    // Predicated region
    $region30: #{tpu_custom_call.1} parent=1 // pred_check
      _
    $region31: #{tpu_custom_call.1} parent=1 // pred_check_branch
      %1552 = sbr.rel (0) target = $region33
    $region32: #{tpu_custom_call.1} parent=1 // pred_region
      %s1554 = ssub.s32 128, 128
      %1555 = vsyncadd [#allocation4], %s1554
      %s1556 = sshll.u32 [#allocation5], 4
      %s1557 = int_to_ptr.vmem [resolvable:$true] %s1556
      %1562 = dma.vmem_to_hbm [thread:$0]  %s1557, 128, %s6, [#allocation4], 32, 32, 2
    $region33: #{tpu_custom_call.1} parent=1 // pred_fallthru
      _
    // Predicated region
    $region34: #{tpu_custom_call.1} parent=1 // pred_check
      _
    $region35: #{tpu_custom_call.1} parent=1 // pred_check_branch
      %1564 = sbr.rel (0) target = $region37
    $region36: #{tpu_custom_call.1} parent=1 // pred_region
      %1565 = dma.done [#allocation4], 128
    $region37: #{tpu_custom_call.1} parent=1 // pred_fallthru
      _
    %1566 = vsyncpa [#allocation3], 1
    %1567 = vsyncpa [#allocation4], 1

</llo_original>
